<compile_context>
chip_gen: v7x
topology: tpu7x:2x2x1
jax: 0.10.0
libtpu: 0.0.40
codegen_flags: <defaults>
</compile_context>

<pallas_src>
import functools

import jax
import jax.numpy as jnp
from jax.experimental import pallas as pl
from jax.experimental.pallas import tpu as pltpu


# ---------------------------------------------------------------------------
# kernel
# ---------------------------------------------------------------------------
def _fast_guided_filter_kernel(mw_ref, invch_ref, rwt_ref, rh_ref,
                               lrx_ref, lry_ref, hrx_ref, out_ref,
                               *, eps: float, r: int):
    mw = mw_ref[...]          # (W, W)   0/1 band, columns pre-scaled by 1/count_w
    inv_ch = invch_ref[...]   # (H, W)   1/count_h, broadcast along W
    rwt = rwt_ref[...]        # (W, Wh)  bilinear col-interp matrix (transposed)
    rh = rh_ref[...]          # (Hh, H)  bilinear row-interp matrix

    x = lrx_ref[...].astype(jnp.float32)   # (cb, H+2r, W)  rows zero-padded by r
    y = lry_ref[...].astype(jnp.float32)
    cb, hp, w = x.shape
    h = hp - 2 * r
    hh = rh.shape[0]
    wh = rwt.shape[1]

    # --- box(x), box(y), box(x*y), box(x*x), already divided by N ------------
    # W direction: one large MXU matmul with M = 4*cb*(H+2r) (1/count_w folded in).
    stacked = jnp.concatenate([x, y, x * y, x * x], axis=0)            # (4cb, Hp, W)
    colpass = jnp.dot(stacked.reshape(4 * cb * hp, w), mw,
                      preferred_element_type=jnp.float32)
    colpass = colpass.reshape(4 * cb, hp, w)
    # H direction: (2r+1)-tap shift-add over the zero-padded rows.  O(2r+1)
    # work per element instead of an O(H) banded matmul, and no tiny per-channel
    # matmuls / broadcast band copies.  (For large r a running-sum would be used.)
    boxed = colpass[:, 0:h, :]
    for s in range(1, 2 * r + 1):
        boxed = boxed + colpass[:, s:s + h, :]
    means = boxed * inv_ch[None, :, :]                                  # (4cb, H, W)

    mean_x = means[0 * cb:1 * cb]
    mean_y = means[1 * cb:2 * cb]
    cov_xy = means[2 * cb:3 * cb] - mean_x * mean_y
    var_x = means[3 * cb:4 * cb] - mean_x * mean_x
    A = cov_xy / (var_x + eps)
    b = mean_y - A * mean_x

    # --- bilinear upsample of [A; b] -----------------------------------------
    ab = jnp.concatenate([A, b], axis=0)                                # (2cb, H, W)
    wup = jnp.dot(ab.reshape(2 * cb * h, w), rwt,
                  preferred_element_type=jnp.float32).reshape(2 * cb, h, wh)
    rh_b = jnp.broadcast_to(rh[None], (2 * cb, hh, h))
    up = jnp.einsum("buh,bhw->buw", rh_b, wup,
                    preferred_element_type=jnp.float32)                 # (2cb, Hh, Wh)

    hr = hrx_ref[...].astype(jnp.float32)                               # (cb, Hh, Wh)
    out = jnp.clip(up[:cb] * hr + up[cb:], 0.0, 1.0)
    out_ref[...] = out.astype(out_ref.dtype)


# ---------------------------------------------------------------------------
# wrapper-side constant builders / sizing
# ---------------------------------------------------------------------------
def _band_matrix(n: int, r: int) -> jax.Array:
    i = jnp.arange(n)
    return (jnp.abs(i[:, None] - i[None, :]) <= r).astype(jnp.float32)


def _box_counts(n: int, r: int) -> jax.Array:
    i = jnp.arange(n)
    return (jnp.minimum(i + r, n - 1) - jnp.maximum(i - r, 0) + 1).astype(jnp.float32)


def _interp_matrix(out_size: int, in_size: int) -> jax.Array:
    """PyTorch F.interpolate(bilinear, align_corners=False) as a matrix (out, in)."""
    scale = in_size / out_size
    o = jnp.arange(out_size, dtype=jnp.float32)
    s = jnp.maximum((o + 0.5) * scale - 0.5, 0.0)
    i0 = jnp.minimum(jnp.floor(s).astype(jnp.int32), in_size - 1)
    i1 = jnp.minimum(i0 + 1, in_size - 1)
    w1 = s - i0.astype(jnp.float32)
    w0 = 1.0 - w1
    m = jnp.zeros((out_size, in_size), jnp.float32)
    rows = jnp.arange(out_size)
    m = m.at[rows, i0].add(w0)
    m = m.at[rows, i1].add(w1)
    return m


def _vmem_capacity_bytes() -> int:
    try:
        return int(pltpu.get_tpu_info().vmem_capacity_bytes)
    except Exception:
        return 64 << 20     # conservative: assume the smallest (v7x-class) VMEM


def _pick_block_channels(nc: int, hp: int, w: int, hh: int, wh: int,
                         budget_bytes: int) -> int:
    """Channels per grid step: as many as fit the budget, dividing N*C, grid>=2."""
    per_chan = 4 * (2 * hp * w + 2 * hh * wh      # lr_x/lr_y + hr_x/out blocks
                    + 16 * hp * w                 # stacked / colpass / boxed / A,b temps
                    + 2 * hp * wh + 2 * hh * hp   # wup + broadcast rh operand
                    + 2 * hh * wh)                # upsampled A,b
    cb = max(1, min(nc, int(budget_bytes) // max(per_chan, 1)))
    if nc >= 2:
        cb = min(cb, nc // 2)   # keep >= 2 grid steps for dual-TC / megacore parts
    while nc % cb != 0:
        cb -= 1
    return cb


# ---------------------------------------------------------------------------
# public entry point
# ---------------------------------------------------------------------------
def fast_guided_filter(lr_x: jax.Array, lr_y: jax.Array, hr_x: jax.Array,
                       r: int, eps: float = 1e-5) -> jax.Array:
    assert lr_x.ndim == 4 and lr_y.ndim == 4 and hr_x.ndim == 4
    n, c, h, w = lr_x.shape
    assert lr_y.shape == lr_x.shape
    n2, c2, hh, wh = hr_x.shape
    assert (n2, c2) == (n, c)
    assert h >= 2 * r + 1 and w >= 2 * r + 1, "reference requires H,W >= 2r+1"
    r = int(r)

    # Hoisted constants (DMA'd once, VMEM-resident across the grid).
    count_h = _box_counts(h, r)                                   # (H,)
    count_w = _box_counts(w, r)                                   # (W,)
    mw = _band_matrix(w, r) / count_w[None, :]                    # (W, W) col-scaled band
    inv_ch = jnp.broadcast_to((1.0 / count_h)[:, None], (h, w))   # (H, W)
    rwt = _interp_matrix(wh, w).T                                 # (W, Wh)
    rh = _interp_matrix(hh, h)                                    # (Hh, H)

    nc = n * c
    hp = h + 2 * r
    # Zero-pad rows so the in-kernel H-direction box is a plain shifted-slice sum.
    lrx_p = jnp.pad(lr_x.reshape(nc, h, w), ((0, 0), (r, r), (0, 0)))
    lry_p = jnp.pad(lr_y.reshape(nc, h, w), ((0, 0), (r, r), (0, 0)))
    hrx2 = hr_x.reshape(nc, hh, wh)

    phys_vmem = _vmem_capacity_bytes()
    budget = max(8 << 20, min(24 << 20, phys_vmem // 5))
    cb = _pick_block_channels(nc, hp, w, hh, wh, budget)
    grid = nc // cb

    # Explicit VMEM limit: double-buffered I/O blocks + resident constants +
    # in-kernel temporaries (incl. the broadcast rh operand) + headroom,
    # capped per-generation (<= 3/4 of physical VMEM, never above 96 MiB).
    block_io = cb * (2 * hp * w + 2 * hh * wh) * 4
    const_b = (w * w + h * w + w * wh + hh * h) * 4
    interm = cb * (20 * hp * w + 2 * hp * wh + 2 * hh * hp + 6 * hh * wh) * 4
    need = 2 * block_io + 2 * const_b + interm + (8 << 20)
    cap = min(96 << 20, (phys_vmem * 3) // 4)
    vmem_limit = int(min(max(need, 32 << 20), cap))

    out = pl.pallas_call(
        functools.partial(_fast_guided_filter_kernel, eps=float(eps), r=r),
        out_shape=jax.ShapeDtypeStruct((nc, hh, wh), hr_x.dtype),
        grid_spec=pltpu.PrefetchScalarGridSpec(
            num_scalar_prefetch=0,
            grid=(grid,),
            in_specs=[
                pl.BlockSpec((w, w), lambda i: (0, 0)),            # mw     (resident)
                pl.BlockSpec((h, w), lambda i: (0, 0)),            # inv_ch (resident)
                pl.BlockSpec((w, wh), lambda i: (0, 0)),           # rwt    (resident)
                pl.BlockSpec((hh, h), lambda i: (0, 0)),           # rh     (resident)
                pl.BlockSpec((cb, hp, w), lambda i: (i, 0, 0)),    # lr_x block (padded)
                pl.BlockSpec((cb, hp, w), lambda i: (i, 0, 0)),    # lr_y block (padded)
                pl.BlockSpec((cb, hh, wh), lambda i: (i, 0, 0)),   # hr_x block
            ],
            out_specs=pl.BlockSpec((cb, hh, wh), lambda i: (i, 0, 0)),
        ),
        compiler_params=pltpu.CompilerParams(
            dimension_semantics=("parallel",),
            vmem_limit_bytes=vmem_limit,
        ),
    )(mw, inv_ch, rwt, rh, lrx_p, lry_p, hrx2)

    return out.reshape(n, c, hh, wh)


# ---------------------------------------------------------------------------
# pure-JAX reference (mirrors the PyTorch module) for the sanity check
# ---------------------------------------------------------------------------
def _diff_cols(y, r):
    left = y[:, :, :, r:2 * r + 1]
    middle = y[:, :, :, 2 * r + 1:] - y[:, :, :, :-2 * r - 1]
    right = y[:, :, :, -1:] - y[:, :, :, -2 * r - 1:-r - 1]
    return jnp.concatenate([left, middle, right], axis=3)


def _diff_rows(y, r):
    left = y[:, :, r:2 * r + 1]
    middle = y[:, :, 2 * r + 1:] - y[:, :, :-2 * r - 1]
    right = y[:, :, -1:] - y[:, :, -2 * r - 1:-r - 1]
    return jnp.concatenate([left, middle, right], axis=2)


def _box_filter_ref(x, r):
    return _diff_cols(_diff_rows(jnp.cumsum(x, axis=2), r).cumsum(axis=3), r)


def _interp_bilinear_ref(x, out_h, out_w):
    _, _, H, W = x.shape

    def src(out_size, in_size):
        scale = in_size / out_size
        o = jnp.arange(out_size, dtype=jnp.float32)
        s = jnp.maximum((o + 0.5) * scale - 0.5, 0.0)
        i0 = jnp.minimum(jnp.floor(s).astype(jnp.int32), in_size - 1)
        i1 = jnp.minimum(i0 + 1, in_size - 1)
        w1 = s - i0.astype(jnp.float32)
        return i0, i1, 1.0 - w1, w1

    hi0, hi1, hw0, hw1 = src(out_h, H)
    wi0, wi1, ww0, ww1 = src(out_w, W)
    xr = x[:, :, hi0, :] * hw0[None, None, :, None] + x[:, :, hi1, :] * hw1[None, None, :, None]
    return xr[:, :, :, wi0] * ww0 + xr[:, :, :, wi1] * ww1


def _fast_guided_filter_ref(lr_x, lr_y, hr_x, r, eps):
    _, _, hh, wh = hr_x.shape
    N = _box_filter_ref(jnp.ones_like(lr_x)[:, 0:1, :, :], r)
    mean_x = _box_filter_ref(lr_x, r) / N
    mean_y = _box_filter_ref(lr_y, r) / N
    cov_xy = _box_filter_ref(lr_x * lr_y, r) / N - mean_x * mean_y
    var_x = _box_filter_ref(lr_x * lr_x, r) / N - mean_x * mean_x
    A = cov_xy / (var_x + eps)
    b = mean_y - A * mean_x
    mean_A = _interp_bilinear_ref(A, hh, wh)
    mean_b = _interp_bilinear_ref(b, hh, wh)
    return jnp.clip(mean_A * hr_x + mean_b, 0.0, 1.0)


if __name__ == "__main__":
    r, eps = 2, 1e-5
    n, c, h, w = 2, 4, 16, 16
    hh, wh = 32, 32

    key = jax.random.PRNGKey(0)
    k1, k2, k3 = jax.random.split(key, 3)
    lr_x = jax.random.uniform(k1, (n, c, h, w), dtype=jnp.float32)
    lr_y = jax.random.uniform(k2, (n, c, h, w), dtype=jnp.float32)
    hr_x = jax.random.uniform(k3, (n, c, hh, wh), dtype=jnp.float32)

    out = fast_guided_filter(lr_x, lr_y, hr_x, r, eps)
    out = jax.block_until_ready(out)

    ref = _fast_guided_filter_ref(lr_x, lr_y, hr_x, r, eps)
    assert out.shape == ref.shape and out.dtype == ref.dtype
    max_err = float(jnp.max(jnp.abs(out - ref)))
    assert jnp.allclose(out, ref, rtol=1e-3, atol=1e-3), f"mismatch vs reference, max_err={max_err}"

    print("KERNEL_OK")
</pallas_src>

<mosaic_0001>
module attributes {stable_mosaic.version = 11 : i64} {
  func.func @_fast_guided_filter_kernel(%arg0: i32, %arg1: memref<16x16xf32, #tpu.memory_space<vmem>>, %arg2: memref<16x16xf32, #tpu.memory_space<vmem>>, %arg3: memref<16x32xf32, #tpu.memory_space<vmem>>, %arg4: memref<32x16xf32, #tpu.memory_space<vmem>>, %arg5: memref<4x20x16xf32, #tpu.memory_space<vmem>>, %arg6: memref<4x20x16xf32, #tpu.memory_space<vmem>>, %arg7: memref<4x32x32xf32, #tpu.memory_space<vmem>>, %arg8: memref<4x32x32xf32, #tpu.memory_space<vmem>>) attributes {dimension_semantics = [#tpu.dimension_semantics<parallel>], iteration_bounds = array<i64: 2>, scalar_prefetch = 0 : i64, scratch_operands = 0 : i64, tpu.core_type = #tpu.core_type<tc>, window_params = [{pipeline_mode = #tpu.pipeline_mode<synchronous>, transform_indices = @transform_0, window_bounds = array<i64: 16, 16>}, {pipeline_mode = #tpu.pipeline_mode<synchronous>, transform_indices = @transform_1, window_bounds = array<i64: 16, 16>}, {pipeline_mode = #tpu.pipeline_mode<synchronous>, transform_indices = @transform_2, window_bounds = array<i64: 16, 32>}, {pipeline_mode = #tpu.pipeline_mode<synchronous>, transform_indices = @transform_3, window_bounds = array<i64: 32, 16>}, {transform_indices = @transform_4, window_bounds = array<i64: 4, 20, 16>}, {transform_indices = @transform_5, window_bounds = array<i64: 4, 20, 16>}, {transform_indices = @transform_6, window_bounds = array<i64: 4, 32, 32>}, {transform_indices = @transform_7, window_bounds = array<i64: 4, 32, 32>}]} {
    %c0 = arith.constant 0 : index
    %c0_0 = arith.constant 0 : index
    %0 = vector.load %arg1[%c0, %c0_0] : memref<16x16xf32, #tpu.memory_space<vmem>>, vector<16x16xf32>
    %c0_1 = arith.constant 0 : index
    %c0_2 = arith.constant 0 : index
    %1 = vector.load %arg2[%c0_1, %c0_2] : memref<16x16xf32, #tpu.memory_space<vmem>>, vector<16x16xf32>
    %c0_3 = arith.constant 0 : index
    %c0_4 = arith.constant 0 : index
    %2 = vector.load %arg3[%c0_3, %c0_4] : memref<16x32xf32, #tpu.memory_space<vmem>>, vector<16x32xf32>
    %c0_5 = arith.constant 0 : index
    %c0_6 = arith.constant 0 : index
    %3 = vector.load %arg4[%c0_5, %c0_6] : memref<32x16xf32, #tpu.memory_space<vmem>>, vector<32x16xf32>
    %c0_7 = arith.constant 0 : index
    %c0_8 = arith.constant 0 : index
    %c0_9 = arith.constant 0 : index
    %4 = vector.load %arg5[%c0_7, %c0_8, %c0_9] : memref<4x20x16xf32, #tpu.memory_space<vmem>>, vector<4x20x16xf32>
    %c0_10 = arith.constant 0 : index
    %c0_11 = arith.constant 0 : index
    %c0_12 = arith.constant 0 : index
    %5 = vector.load %arg6[%c0_10, %c0_11, %c0_12] : memref<4x20x16xf32, #tpu.memory_space<vmem>>, vector<4x20x16xf32>
    %6 = arith.mulf %4, %5 : vector<4x20x16xf32>
    %7 = arith.mulf %4, %4 : vector<4x20x16xf32>
    %8 = tpu.concatenate %4, %5, %6, %7 in 0 : vector<4x20x16xf32>, vector<4x20x16xf32>, vector<4x20x16xf32>, vector<4x20x16xf32> -> vector<16x20x16xf32>
    %9 = vector.shape_cast %8 : vector<16x20x16xf32> to vector<320x16xf32>
    %cst = arith.constant dense<0.000000e+00> : vector<320x16xf32>
    %10 = tpu.matmul %9, %0, %cst {dimension_numbers = #tpu.dot_dimension_numbers<[1], [0], [0], [1], [0, 0, 1, 1], [], []>} : vector<320x16xf32>, vector<16x16xf32>, vector<320x16xf32> -> vector<320x16xf32>
    %11 = vector.shape_cast %10 : vector<320x16xf32> to vector<16x20x16xf32>
    %12 = vector.extract_strided_slice %11 {offsets = [0, 0, 0], sizes = [16, 16, 16], strides = [1, 1, 1]} : vector<16x20x16xf32> to vector<16x16x16xf32>
    %13 = vector.extract_strided_slice %11 {offsets = [0, 1, 0], sizes = [16, 16, 16], strides = [1, 1, 1]} : vector<16x20x16xf32> to vector<16x16x16xf32>
    %14 = arith.addf %12, %13 : vector<16x16x16xf32>
    %15 = vector.extract_strided_slice %11 {offsets = [0, 2, 0], sizes = [16, 16, 16], strides = [1, 1, 1]} : vector<16x20x16xf32> to vector<16x16x16xf32>
    %16 = arith.addf %14, %15 : vector<16x16x16xf32>
    %17 = vector.extract_strided_slice %11 {offsets = [0, 3, 0], sizes = [16, 16, 16], strides = [1, 1, 1]} : vector<16x20x16xf32> to vector<16x16x16xf32>
    %18 = arith.addf %16, %17 : vector<16x16x16xf32>
    %19 = vector.extract_strided_slice %11 {offsets = [0, 4, 0], sizes = [16, 16, 16], strides = [1, 1, 1]} : vector<16x20x16xf32> to vector<16x16x16xf32>
    %20 = arith.addf %18, %19 : vector<16x16x16xf32>
    %21 = vector.shape_cast %1 : vector<16x16xf32> to vector<1x16x16xf32>
    %22 = vector.broadcast %21 : vector<1x16x16xf32> to vector<16x16x16xf32>
    %23 = arith.mulf %20, %22 : vector<16x16x16xf32>
    %24 = vector.extract_strided_slice %23 {offsets = [0, 0, 0], sizes = [4, 16, 16], strides = [1, 1, 1]} : vector<16x16x16xf32> to vector<4x16x16xf32>
    %25 = vector.extract_strided_slice %23 {offsets = [4, 0, 0], sizes = [4, 16, 16], strides = [1, 1, 1]} : vector<16x16x16xf32> to vector<4x16x16xf32>
    %26 = vector.extract_strided_slice %23 {offsets = [8, 0, 0], sizes = [4, 16, 16], strides = [1, 1, 1]} : vector<16x16x16xf32> to vector<4x16x16xf32>
    %27 = arith.mulf %24, %25 : vector<4x16x16xf32>
    %28 = arith.subf %26, %27 : vector<4x16x16xf32>
    %29 = vector.extract_strided_slice %23 {offsets = [12, 0, 0], sizes = [4, 16, 16], strides = [1, 1, 1]} : vector<16x16x16xf32> to vector<4x16x16xf32>
    %30 = arith.mulf %24, %24 : vector<4x16x16xf32>
    %31 = arith.subf %29, %30 : vector<4x16x16xf32>
    %cst_13 = arith.constant 9.99999974E-6 : f32
    %32 = vector.broadcast %cst_13 : f32 to vector<4x16x16xf32>
    %33 = arith.addf %31, %32 : vector<4x16x16xf32>
    %34 = arith.divf %28, %33 : vector<4x16x16xf32>
    %35 = arith.mulf %34, %24 : vector<4x16x16xf32>
    %36 = arith.subf %25, %35 : vector<4x16x16xf32>
    %37 = tpu.concatenate %34, %36 in 0 : vector<4x16x16xf32>, vector<4x16x16xf32> -> vector<8x16x16xf32>
    %38 = vector.shape_cast %37 : vector<8x16x16xf32> to vector<128x16xf32>
    %cst_14 = arith.constant dense<0.000000e+00> : vector<128x32xf32>
    %39 = tpu.matmul %38, %2, %cst_14 {dimension_numbers = #tpu.dot_dimension_numbers<[1], [0], [0], [1], [0, 0, 1, 1], [], []>} : vector<128x16xf32>, vector<16x32xf32>, vector<128x32xf32> -> vector<128x32xf32>
    %40 = vector.shape_cast %39 : vector<128x32xf32> to vector<8x16x32xf32>
    %41 = vector.shape_cast %3 : vector<32x16xf32> to vector<1x32x16xf32>
    %42 = vector.shape_cast %41 : vector<1x32x16xf32> to vector<1x32x16xf32>
    %43 = vector.broadcast %42 : vector<1x32x16xf32> to vector<8x32x16xf32>
    "tpu.trace_start"() <{level = 10 : i32, message = "buh,bhw->buw"}> : () -> ()
    %cst_15 = arith.constant dense<0.000000e+00> : vector<8x32x32xf32>
    %44 = tpu.matmul %43, %40, %cst_15 {dimension_numbers = #tpu.dot_dimension_numbers<[2], [1], [1], [2], [0, 0, 0, 1, 1, 2], [0], [0]>} : vector<8x32x16xf32>, vector<8x16x32xf32>, vector<8x32x32xf32> -> vector<8x32x32xf32>
    "tpu.trace_stop"() : () -> ()
    %c0_16 = arith.constant 0 : index
    %c0_17 = arith.constant 0 : index
    %c0_18 = arith.constant 0 : index
    %45 = vector.load %arg7[%c0_16, %c0_17, %c0_18] : memref<4x32x32xf32, #tpu.memory_space<vmem>>, vector<4x32x32xf32>
    %46 = vector.extract_strided_slice %44 {offsets = [0, 0, 0], sizes = [4, 32, 32], strides = [1, 1, 1]} : vector<8x32x32xf32> to vector<4x32x32xf32>
    %47 = arith.mulf %46, %45 : vector<4x32x32xf32>
    %48 = vector.extract_strided_slice %44 {offsets = [4, 0, 0], sizes = [4, 32, 32], strides = [1, 1, 1]} : vector<8x32x32xf32> to vector<4x32x32xf32>
    %49 = arith.addf %47, %48 : vector<4x32x32xf32>
    %cst_19 = arith.constant 0.000000e+00 : f32
    %cst_20 = arith.constant 1.000000e+00 : f32
    %50 = vector.broadcast %cst_19 : f32 to vector<4x32x32xf32>
    %51 = arith.maximumf %50, %49 : vector<4x32x32xf32>
    %52 = vector.broadcast %cst_20 : f32 to vector<4x32x32xf32>
    %53 = arith.minimumf %52, %51 : vector<4x32x32xf32>
    %c0_21 = arith.constant 0 : index
    %c0_22 = arith.constant 0 : index
    %c0_23 = arith.constant 0 : index
    %54 = vector.load %arg8[%c0_21, %c0_22, %c0_23] : memref<4x32x32xf32, #tpu.memory_space<vmem>>, vector<4x32x32xf32>
    tpu.vector_store %arg8[%c0_21, %c0_22, %c0_23], %53 {strides = array<i32>} : memref<4x32x32xf32, #tpu.memory_space<vmem>>, vector<4x32x32xf32>,
    return
  }
  func.func @transform_0(%arg0: i32) -> (i32, i32) {
    %c0_i32 = arith.constant 0 : i32
    %c0_i32_0 = arith.constant 0 : i32
    %c0_i32_1 = arith.constant 0 : i32
    return %c0_i32, %c0_i32_0 : i32, i32
  }
  func.func @transform_1(%arg0: i32) -> (i32, i32) {
    %c0_i32 = arith.constant 0 : i32
    %c0_i32_0 = arith.constant 0 : i32
    %c0_i32_1 = arith.constant 0 : i32
    return %c0_i32, %c0_i32_0 : i32, i32
  }
  func.func @transform_2(%arg0: i32) -> (i32, i32) {
    %c0_i32 = arith.constant 0 : i32
    %c0_i32_0 = arith.constant 0 : i32
    %c0_i32_1 = arith.constant 0 : i32
    return %c0_i32, %c0_i32_0 : i32, i32
  }
  func.func @transform_3(%arg0: i32) -> (i32, i32) {
    %c0_i32 = arith.constant 0 : i32
    %c0_i32_0 = arith.constant 0 : i32
    %c0_i32_1 = arith.constant 0 : i32
    return %c0_i32, %c0_i32_0 : i32, i32
  }
  func.func @transform_4(%arg0: i32) -> (i32, i32, i32) {
    %c0_i32 = arith.constant 0 : i32
    %c0_i32_0 = arith.constant 0 : i32
    %c0_i32_1 = arith.constant 0 : i32
    return %arg0, %c0_i32, %c0_i32_0 : i32, i32, i32
  }
  func.func @transform_5(%arg0: i32) -> (i32, i32, i32) {
    %c0_i32 = arith.constant 0 : i32
    %c0_i32_0 = arith.constant 0 : i32
    %c0_i32_1 = arith.constant 0 : i32
    return %arg0, %c0_i32, %c0_i32_0 : i32, i32, i32
  }
  func.func @transform_6(%arg0: i32) -> (i32, i32, i32) {
    %c0_i32 = arith.constant 0 : i32
    %c0_i32_0 = arith.constant 0 : i32
    %c0_i32_1 = arith.constant 0 : i32
    return %arg0, %c0_i32, %c0_i32_0 : i32, i32, i32
  }
  func.func @transform_7(%arg0: i32) -> (i32, i32, i32) {
    %c0_i32 = arith.constant 0 : i32
    %c0_i32_0 = arith.constant 0 : i32
    %c0_i32_1 = arith.constant 0 : i32
    return %arg0, %c0_i32, %c0_i32_0 : i32, i32, i32
  }
}

</mosaic_0001>

<llo_original>
// kernel: tpu_custom_call.1
$region0: #{tpu_custom_call.1}
  #allocation0 [shape = 'u32[]', space=smem, size = 0x4, offset = 0x4, fixed_abs, tag = 'smem constant byte address 0x4 - core index']
  #allocation1 [shape = 'u32[144,128]{1,0:T(1,128)}', space=vmem, size = 0x12000, scoped, tag = 'internal scratch']
  %s0 = inlined_call_operand.vmem [shape: f32[16,16], index: 0, kind: input, shape index: {}]
  %s1 = inlined_call_operand.vmem [shape: f32[16,16], index: 1, kind: input, shape index: {}]
  %s2 = inlined_call_operand.vmem [shape: f32[16,32], index: 2, kind: input, shape index: {}]
  %s3 = inlined_call_operand.vmem [shape: f32[32,16], index: 3, kind: input, shape index: {}]
  %s4 = inlined_call_operand.vmem [shape: f32[8,20,16], index: 4, kind: input, shape index: {}]
  %s5 = inlined_call_operand.vmem [shape: f32[8,20,16], index: 5, kind: input, shape index: {}]
  %s6 = inlined_call_operand.vmem [shape: f32[8,32,32], index: 6, kind: input, shape index: {}]
  %s7 = inlined_call_operand.hbm [shape: f32[8,32,32], index: 7, kind: output, shape index: {}]
  %s8 = sld [smem:[#allocation0]]
  $region61: #{tpu_custom_call.1} parent=0
    _
  %s10 = ssub.s32 1, %s8
  %s11 = scalar_select 0, %s10, %s8
  $region1: #{tpu_custom_call.1} parent=0
    #allocation2 [shape = 'u8[131072]{0}', space=vmem, size = 0x20000, scoped, tag = 'output window, operand 0']
    #allocation3 [shape = 's32[2]{0}', space=sflag, size = 0x8, scoped, tag = 'scoped memory for tpu_custom_call.1']
    %12 = vsyncpa [#allocation3], 0
    %s13 = scalar_lea.sflag [#allocation3], 1
    %14 = vsyncpa %s13, 0
    loop: start=0, step=1, limit=4
    $region2: #{tpu_custom_call.1} parent=1 // loop_pre_header
      _
    $region3: #{tpu_custom_call.1} parent=1 // loop_header
      %s16 = sphi 0, %s20
      %p17 = scmp.ge.s32.totalorder %s16, 4
      %s24 = sphi 0, %s24
      %s26 = sphi 0, %s24
      %s27 = sphi 0, %s26
      %s41 = sphi 0, %s27
      %s45 = sphi 0, %s45
      %s47 = sphi 0, %s45
      %s48 = sphi 0, %s47
      %s62 = sphi 0, %s48
      %s66 = sphi 0, %s66
      %s68 = sphi 0, %s66
      %s69 = sphi 0, %s68
      %s83 = sphi 0, %s69
      %s87 = sphi 0, %s87
      %s89 = sphi 0, %s87
      %s90 = sphi 0, %s89
      %s104 = sphi 0, %s90
      %s110 = sphi 0, %s112
      %s113 = sphi 0, %s110
      %s114 = sphi 0, %s113
      %s130 = sphi 0, %s114
      %s136 = sphi 0, %s138
      %s139 = sphi 0, %s136
      %s140 = sphi 0, %s139
      %s156 = sphi 0, %s140
      %s162 = sphi 0, %s164
      %s165 = sphi 0, %s162
      %s166 = sphi 0, %s165
      %s182 = sphi 0, %s166
      %s188 = sphi 0, %s190
      %s191 = sphi 0, %s188
      %s192 = sphi 0, %s191
      %s208 = sphi 0, %s192
    $region4: #{tpu_custom_call.1} parent=1 // loop_header_branch
      %19 = sbr.rel (%p17) target = $region8
    $region5: #{tpu_custom_call.1} parent=1 // loop_body
      %s21 = ssub.s32 %s16, 1
      %s22 = ssub.s32 %s16, 2
      %s23 = sadd.s32 %s16, 1
      %s25 = sadd.s32 %s24, 1
      %p28 = scmp.eq.s32.totalorder %s16, 1
      %p29 = scmp.ne.s32.totalorder %s24, %s26
      %p30 = scmp.eq.s32.totalorder %s16, 0
      %p31 = por %p29, %p30
      %p32 = scmp.ne.s32.totalorder %s24, %s26
      %p33 = scmp.eq.s32.totalorder %s21, 1
      %p34 = por %p32, %p33
      %p35 = scmp.ne.s32.totalorder %s26, %s27
      %p36 = scmp.eq.s32.totalorder %s21, 0
      %p37 = por %p35, %p36
      %p38 = scmp.ne.s32.totalorder %s26, %s27
      %p39 = scmp.eq.s32.totalorder %s22, 1
      %p40 = por %p38, %p39
      %p42 = scmp.ne.s32.totalorder %s27, %s41
      %p43 = scmp.eq.s32.totalorder %s22, 0
      %p44 = por %p42, %p43
      %s46 = sadd.s32 %s45, 1
      %p49 = scmp.eq.s32.totalorder %s16, 1
      %p50 = scmp.ne.s32.totalorder %s45, %s47
      %p51 = scmp.eq.s32.totalorder %s16, 0
      %p52 = por %p50, %p51
      %p53 = scmp.ne.s32.totalorder %s45, %s47
      %p54 = scmp.eq.s32.totalorder %s21, 1
      %p55 = por %p53, %p54
      %p56 = scmp.ne.s32.totalorder %s47, %s48
      %p57 = scmp.eq.s32.totalorder %s21, 0
      %p58 = por %p56, %p57
      %p59 = scmp.ne.s32.totalorder %s47, %s48
      %p60 = scmp.eq.s32.totalorder %s22, 1
      %p61 = por %p59, %p60
      %p63 = scmp.ne.s32.totalorder %s48, %s62
      %p64 = scmp.eq.s32.totalorder %s22, 0
      %p65 = por %p63, %p64
      %s67 = sadd.s32 %s66, 1
      %p70 = scmp.eq.s32.totalorder %s16, 1
      %p71 = scmp.ne.s32.totalorder %s66, %s68
      %p72 = scmp.eq.s32.totalorder %s16, 0
      %p73 = por %p71, %p72
      %p74 = scmp.ne.s32.totalorder %s66, %s68
      %p75 = scmp.eq.s32.totalorder %s21, 1
      %p76 = por %p74, %p75
      %p77 = scmp.ne.s32.totalorder %s68, %s69
      %p78 = scmp.eq.s32.totalorder %s21, 0
      %p79 = por %p77, %p78
      %p80 = scmp.ne.s32.totalorder %s68, %s69
      %p81 = scmp.eq.s32.totalorder %s22, 1
      %p82 = por %p80, %p81
      %p84 = scmp.ne.s32.totalorder %s69, %s83
      %p85 = scmp.eq.s32.totalorder %s22, 0
      %p86 = por %p84, %p85
      %s88 = sadd.s32 %s87, 1
      %p91 = scmp.eq.s32.totalorder %s16, 1
      %p92 = scmp.ne.s32.totalorder %s87, %s89
      %p93 = scmp.eq.s32.totalorder %s16, 0
      %p94 = por %p92, %p93
      %p95 = scmp.ne.s32.totalorder %s87, %s89
      %p96 = scmp.eq.s32.totalorder %s21, 1
      %p97 = por %p95, %p96
      %p98 = scmp.ne.s32.totalorder %s89, %s90
      %p99 = scmp.eq.s32.totalorder %s21, 0
      %p100 = por %p98, %p99
      %p101 = scmp.ne.s32.totalorder %s89, %s90
      %p102 = scmp.eq.s32.totalorder %s22, 1
      %p103 = por %p101, %p102
      %p105 = scmp.ne.s32.totalorder %s90, %s104
      %p106 = scmp.eq.s32.totalorder %s22, 0
      %p107 = por %p105, %p106
      %s108 = ssub.s32 %s16, %s23
      %p109 = scmp.eq.s32.totalorder %s108, 0
      %s111 = sadd.s32 %s110, 1
      %s112 = scalar_select %p109, %s110, %s111
      %p115 = pneg %p109
      %p116 = scmp.eq.s32.totalorder %s16, 1
      %p117 = por %p115, %p116
      %p118 = scmp.ne.s32.totalorder %s110, %s113
      %p119 = scmp.eq.s32.totalorder %s16, 0
      %p120 = por %p118, %p119
      %p121 = scmp.ne.s32.totalorder %s110, %s113
      %p122 = scmp.eq.s32.totalorder %s21, 1
      %p123 = por %p121, %p122
      %p124 = scmp.ne.s32.totalorder %s113, %s114
      %p125 = scmp.eq.s32.totalorder %s21, 0
      %p126 = por %p124, %p125
      %p127 = scmp.ne.s32.totalorder %s113, %s114
      %p128 = scmp.eq.s32.totalorder %s22, 1
      %p129 = por %p127, %p128
      %p131 = scmp.ne.s32.totalorder %s114, %s130
      %p132 = scmp.eq.s32.totalorder %s22, 0
      %p133 = por %p131, %p132
      %s134 = ssub.s32 %s16, %s23
      %p135 = scmp.eq.s32.totalorder %s134, 0
      %s137 = sadd.s32 %s136, 1
      %s138 = scalar_select %p135, %s136, %s137
      %p141 = pneg %p135
      %p142 = scmp.eq.s32.totalorder %s16, 1
      %p143 = por %p141, %p142
      %p144 = scmp.ne.s32.totalorder %s136, %s139
      %p145 = scmp.eq.s32.totalorder %s16, 0
      %p146 = por %p144, %p145
      %p147 = scmp.ne.s32.totalorder %s136, %s139
      %p148 = scmp.eq.s32.totalorder %s21, 1
      %p149 = por %p147, %p148
      %p150 = scmp.ne.s32.totalorder %s139, %s140
      %p151 = scmp.eq.s32.totalorder %s21, 0
      %p152 = por %p150, %p151
      %p153 = scmp.ne.s32.totalorder %s139, %s140
      %p154 = scmp.eq.s32.totalorder %s22, 1
      %p155 = por %p153, %p154
      %p157 = scmp.ne.s32.totalorder %s140, %s156
      %p158 = scmp.eq.s32.totalorder %s22, 0
      %p159 = por %p157, %p158
      %s160 = ssub.s32 %s16, %s23
      %p161 = scmp.eq.s32.totalorder %s160, 0
      %s163 = sadd.s32 %s162, 1
      %s164 = scalar_select %p161, %s162, %s163
      %p167 = pneg %p161
      %p168 = scmp.eq.s32.totalorder %s16, 1
      %p169 = por %p167, %p168
      %p170 = scmp.ne.s32.totalorder %s162, %s165
      %p171 = scmp.eq.s32.totalorder %s16, 0
      %p172 = por %p170, %p171
      %p173 = scmp.ne.s32.totalorder %s162, %s165
      %p174 = scmp.eq.s32.totalorder %s21, 1
      %p175 = por %p173, %p174
      %p176 = scmp.ne.s32.totalorder %s165, %s166
      %p177 = scmp.eq.s32.totalorder %s21, 0
      %p178 = por %p176, %p177
      %p179 = scmp.ne.s32.totalorder %s165, %s166
      %p180 = scmp.eq.s32.totalorder %s22, 1
      %p181 = por %p179, %p180
      %p183 = scmp.ne.s32.totalorder %s166, %s182
      %p184 = scmp.eq.s32.totalorder %s22, 0
      %p185 = por %p183, %p184
      %s186 = ssub.s32 %s16, %s23
      %p187 = scmp.eq.s32.totalorder %s186, 0
      %s189 = sadd.s32 %s188, 1
      %s190 = scalar_select %p187, %s188, %s189
      %p193 = pneg %p187
      %p194 = scmp.eq.s32.totalorder %s16, 1
      %p195 = por %p193, %p194
      %p196 = scmp.ne.s32.totalorder %s188, %s191
      %p197 = scmp.eq.s32.totalorder %s16, 0
      %p198 = por %p196, %p197
      %p199 = scmp.ne.s32.totalorder %s188, %s191
      %p200 = scmp.eq.s32.totalorder %s21, 1
      %p201 = por %p199, %p200
      %p202 = scmp.ne.s32.totalorder %s191, %s192
      %p203 = scmp.eq.s32.totalorder %s21, 0
      %p204 = por %p202, %p203
      %p205 = scmp.ne.s32.totalorder %s191, %s192
      %p206 = scmp.eq.s32.totalorder %s22, 1
      %p207 = por %p205, %p206
      %p209 = scmp.ne.s32.totalorder %s192, %s208
      %p210 = scmp.eq.s32.totalorder %s22, 0
      %p211 = por %p209, %p210
      %p212 = scmp.le.s32.totalorder 1, %s16
      %p213 = scmp.lt.s32.totalorder %s16, 3
      %p214 = pnand %p212, %p213
      %p215 = pneg %p214
      // Predicated region
      $region9: #{tpu_custom_call.1} parent=5 // pred_check
        _
      $region10: #{tpu_custom_call.1} parent=5 // pred_check_branch
        %217 = sbr.rel (%p214) target = $region12
      $region11: #{tpu_custom_call.1} parent=5 // pred_region
        %s218 = ssub.s32 %s16, 1
        // Predicated region
        $region13: #{tpu_custom_call.1} parent=11 // pred_check
          %p219 = pneg %p37
        $region14: #{tpu_custom_call.1} parent=11 // pred_check_branch
          %221 = sbr.rel (%p219) target = $region16
        $region15: #{tpu_custom_call.1} parent=11 // pred_region
          _
        $region16: #{tpu_custom_call.1} parent=11 // pred_fallthru
          _
        // Predicated region
        $region17: #{tpu_custom_call.1} parent=11 // pred_check
          %p222 = pneg %p58
        $region18: #{tpu_custom_call.1} parent=11 // pred_check_branch
          %224 = sbr.rel (%p222) target = $region20
        $region19: #{tpu_custom_call.1} parent=11 // pred_region
          _
        $region20: #{tpu_custom_call.1} parent=11 // pred_fallthru
          _
        // Predicated region
        $region21: #{tpu_custom_call.1} parent=11 // pred_check
          %p225 = pneg %p79
        $region22: #{tpu_custom_call.1} parent=11 // pred_check_branch
          %227 = sbr.rel (%p225) target = $region24
        $region23: #{tpu_custom_call.1} parent=11 // pred_region
          _
        $region24: #{tpu_custom_call.1} parent=11 // pred_fallthru
          _
        // Predicated region
        $region25: #{tpu_custom_call.1} parent=11 // pred_check
          %p228 = pneg %p100
        $region26: #{tpu_custom_call.1} parent=11 // pred_check_branch
          %230 = sbr.rel (%p228) target = $region28
        $region27: #{tpu_custom_call.1} parent=11 // pred_region
          _
        $region28: #{tpu_custom_call.1} parent=11 // pred_fallthru
          _
      $region12: #{tpu_custom_call.1} parent=5 // pred_fallthru
        _
      %p231 = scmp.lt.s32.totalorder %s16, 2
      // Predicated region
      $region29: #{tpu_custom_call.1} parent=5 // pred_check
        %p232 = pneg %p231
      $region30: #{tpu_custom_call.1} parent=5 // pred_check_branch
        %234 = sbr.rel (%p232) target = $region32
      $region31: #{tpu_custom_call.1} parent=5 // pred_region
        // Predicated region
        $region33: #{tpu_custom_call.1} parent=31 // pred_check
          %p235 = pneg %p120
        $region34: #{tpu_custom_call.1} parent=31 // pred_check_branch
          %237 = sbr.rel (%p235) target = $region36
        $region35: #{tpu_custom_call.1} parent=31 // pred_region
          %s238 = smul.u32 4, %s16
          %p239 = scmp.lt.s32.totalorder %s238, 7
          %s240 = scalar_select %p239, %s238, 7
          %s241 = smul.addr %s240, 3
          %s242 = smul.addr %s241, 8
          %s243 = scalar_lea.vmem %s4, %s242
          %s244 = smul.u32 4, %s16
        $region36: #{tpu_custom_call.1} parent=31 // pred_fallthru
          _
        // Predicated region
        $region37: #{tpu_custom_call.1} parent=31 // pred_check
          %p245 = pneg %p146
        $region38: #{tpu_custom_call.1} parent=31 // pred_check_branch
          %247 = sbr.rel (%p245) target = $region40
        $region39: #{tpu_custom_call.1} parent=31 // pred_region
          %s248 = smul.u32 4, %s16
          %p249 = scmp.lt.s32.totalorder %s248, 7
          %s250 = scalar_select %p249, %s248, 7
          %s251 = smul.addr %s250, 3
          %s252 = smul.addr %s251, 8
          %s253 = scalar_lea.vmem %s5, %s252
          %s254 = smul.u32 4, %s16
        $region40: #{tpu_custom_call.1} parent=31 // pred_fallthru
          _
        // Predicated region
        $region41: #{tpu_custom_call.1} parent=31 // pred_check
          %p255 = pneg %p172
        $region42: #{tpu_custom_call.1} parent=31 // pred_check_branch
          %257 = sbr.rel (%p255) target = $region44
        $region43: #{tpu_custom_call.1} parent=31 // pred_region
          %s258 = smul.u32 4, %s16
          %p259 = scmp.lt.s32.totalorder %s258, 7
          %s260 = scalar_select %p259, %s258, 7
          %s261 = smul.addr %s260, 4
          %s262 = smul.addr %s261, 8
          %s263 = scalar_lea.vmem %s6, %s262
          %s264 = smul.u32 4, %s16
        $region44: #{tpu_custom_call.1} parent=31 // pred_fallthru
          _
      $region32: #{tpu_custom_call.1} parent=5 // pred_fallthru
        _
      %p265 = scmp.le.s32.totalorder 1, %s16
      %p266 = scmp.lt.s32.totalorder %s16, 3
      %p267 = pnand %p265, %p266
      %p268 = pneg %p267
      // Predicated region
      $region45: #{tpu_custom_call.1} parent=5 // pred_check
        _
      $region46: #{tpu_custom_call.1} parent=5 // pred_check_branch
        %270 = sbr.rel (%p267) target = $region48
      $region47: #{tpu_custom_call.1} parent=5 // pred_region
        %s271 = ssub.s32 %s16, 1
        %p272 = pneg %p37
        %p273 = pneg %p34
        %p274 = pneg %p58
        %p275 = pneg %p55
        %p276 = pneg %p79
        %p277 = pneg %p76
        %p278 = pneg %p100
        %p279 = pneg %p97
        %s280 = smul.u32 4, %s21
        %p281 = scmp.lt.s32.totalorder %s280, 7
        %s282 = scalar_select %p281, %s280, 7
        %s283 = smul.addr %s282, 3
        %s284 = smul.addr %s283, 8
        %s285 = scalar_lea.vmem %s4, %s284
        %p286 = pneg %p126
        %p287 = pneg %p123
        %s288 = smul.u32 4, %s21
        %p289 = scmp.lt.s32.totalorder %s288, 7
        %s290 = scalar_select %p289, %s288, 7
        %s291 = smul.addr %s290, 3
        %s292 = smul.addr %s291, 8
        %s293 = scalar_lea.vmem %s5, %s292
        %p294 = pneg %p152
        %p295 = pneg %p149
        %s296 = smul.u32 4, %s21
        %p297 = scmp.lt.s32.totalorder %s296, 7
        %s298 = scalar_select %p297, %s296, 7
        %s299 = smul.addr %s298, 4
        %s300 = smul.addr %s299, 8
        %s301 = scalar_lea.vmem %s6, %s300
        %p302 = pneg %p178
        %p303 = pneg %p175
        %p304 = pneg %p204
        %p305 = pneg %p201
        %s306 = sand.u32 %s191, 1
        %s307 = scalar_lea.sflag [#allocation3], %s306
        %s308 = sand.u32 %s191, 1
        %s309 = smul.addr %s308, 128
        %s310 = scalar_lea.vmem [#allocation2], %s309
        %s311 = smul.u32 4, %s21
        %p312 = scmp.lt.s32.totalorder %s311, 7
        %s313 = scalar_select %p312, %s311, 7
        %s314 = smul.addr %s313, 3
        %s315 = smul.addr %s314, 8
        %s316 = scalar_lea.vmem %s4, %s315
        %s317 = smul.u32 4, %s21
        %s318 = smul.u32 4, %s21
        %p319 = scmp.lt.s32.totalorder %s318, 7
        %s320 = scalar_select %p319, %s318, 7
        %s321 = smul.addr %s320, 3
        %s322 = smul.addr %s321, 8
        %s323 = scalar_lea.vmem %s5, %s322
        %s324 = smul.u32 4, %s21
        %s325 = smul.u32 4, %s21
        %p326 = scmp.lt.s32.totalorder %s325, 7
        %s327 = scalar_select %p326, %s325, 7
        %s328 = smul.addr %s327, 4
        %s329 = smul.addr %s328, 8
        %s330 = scalar_lea.vmem %s6, %s329
        %s331 = smul.u32 4, %s21
        %s332 = smul.u32 4, %s21
        %v333 = vld [vmem:[%s0] sm:$0xff]
        %v334 = vld [vmem:[%s0 + $0x8] sm:$0xff]
        %v335 = vld [vmem:[%s1] sm:$0xff]
        %v336 = vld [vmem:[%s1 + $0x8] sm:$0xff]
        %v337 = vld [vmem:[%s2] sm:$0xff]
        %v338 = vld [vmem:[%s2 + $0x8] sm:$0xff]
        %v339 = vld [vmem:[%s3] sm:$0xff]
        %v340 = vld [vmem:[%s3 + $0x8] sm:$0xff]
        %v341 = vld [vmem:[%s3 + $0x10] sm:$0xff]
        %v342 = vld [vmem:[%s3 + $0x18] sm:$0xff]
        %v343 = vld [vmem:[%s316] sm:$0xff]
        %v344 = vld [vmem:[%s316 + $0x8] sm:$0xff]
        %v345 = vld [vmem:[%s316 + $0x10] sm:$0xf]
        %v346 = vld [vmem:[%s316 + $0x18] sm:$0xff]
        %v347 = vld [vmem:[%s316 + $0x20] sm:$0xff]
        %v348 = vld [vmem:[%s316 + $0x28] sm:$0xf]
        %v349 = vld [vmem:[%s316 + $0x30] sm:$0xff]
        %v350 = vld [vmem:[%s316 + $0x38] sm:$0xff]
        %v351 = vld [vmem:[%s316 + $0x40] sm:$0xf]
        %v352 = vld [vmem:[%s316 + $0x48] sm:$0xff]
        %v353 = vld [vmem:[%s316 + $0x50] sm:$0xff]
        %v354 = vld [vmem:[%s316 + $0x58] sm:$0xf]
        %v355 = vld [vmem:[%s323] sm:$0xff]
        %v356 = vld [vmem:[%s323 + $0x8] sm:$0xff]
        %v357 = vld [vmem:[%s323 + $0x10] sm:$0xf]
        %v358 = vld [vmem:[%s323 + $0x18] sm:$0xff]
        %v359 = vld [vmem:[%s323 + $0x20] sm:$0xff]
        %v360 = vld [vmem:[%s323 + $0x28] sm:$0xf]
        %v361 = vld [vmem:[%s323 + $0x30] sm:$0xff]
        %v362 = vld [vmem:[%s323 + $0x38] sm:$0xff]
        %v363 = vld [vmem:[%s323 + $0x40] sm:$0xf]
        %v364 = vld [vmem:[%s323 + $0x48] sm:$0xff]
        %v365 = vld [vmem:[%s323 + $0x50] sm:$0xff]
        %v366 = vld [vmem:[%s323 + $0x58] sm:$0xf]
        %v367 = vmul.f32 %v343, %v355
        %v368 = vmul.f32 %v344, %v356
        %v369 = vmul.f32 %v345, %v357
        %v370 = vmul.f32 %v346, %v358
        %v371 = vmul.f32 %v347, %v359
        %v372 = vmul.f32 %v348, %v360
        %v373 = vmul.f32 %v349, %v361
        %v374 = vmul.f32 %v350, %v362
        %v375 = vmul.f32 %v351, %v363
        %v376 = vmul.f32 %v352, %v364
        %v377 = vmul.f32 %v353, %v365
        %v378 = vmul.f32 %v354, %v366
        %v379 = vmul.f32 %v343, %v343
        %v380 = vmul.f32 %v344, %v344
        %v381 = vmul.f32 %v345, %v345
        %v382 = vmul.f32 %v346, %v346
        %v383 = vmul.f32 %v347, %v347
        %v384 = vmul.f32 %v348, %v348
        %v385 = vmul.f32 %v349, %v349
        %v386 = vmul.f32 %v350, %v350
        %v387 = vmul.f32 %v351, %v351
        %v388 = vmul.f32 %v352, %v352
        %v389 = vmul.f32 %v353, %v353
        %v390 = vmul.f32 %v354, %v354
        %v439 = vcombine.high %v343, %v343
        %v440 = vcombine.high %v344, %v344
        %v441 = vcombine.high %v346, %v346
        %v442 = vcombine.high %v347, %v347
        %v443 = vcombine.high %v349, %v349
        %v444 = vcombine.high %v350, %v350
        %v445 = vcombine.high %v352, %v352
        %v446 = vcombine.high %v353, %v353
        %v447 = vcombine.high %v355, %v355
        %v448 = vcombine.high %v356, %v356
        %v449 = vcombine.high %v358, %v358
        %v450 = vcombine.high %v359, %v359
        %v451 = vcombine.high %v361, %v361
        %v452 = vcombine.high %v362, %v362
        %v453 = vcombine.high %v364, %v364
        %v454 = vcombine.high %v365, %v365
        %v455 = vcombine.high %v367, %v367
        %v456 = vcombine.high %v368, %v368
        %v457 = vcombine.high %v370, %v370
        %v458 = vcombine.high %v371, %v371
        %v459 = vcombine.high %v373, %v373
        %v460 = vcombine.high %v374, %v374
        %v461 = vcombine.high %v376, %v376
        %v462 = vcombine.high %v377, %v377
        %v463 = vcombine.high %v379, %v379
        %v464 = vcombine.high %v380, %v380
        %v465 = vcombine.high %v382, %v382
        %v466 = vcombine.high %v383, %v383
        %v467 = vcombine.high %v385, %v385
        %v468 = vcombine.high %v386, %v386
        %v469 = vcombine.high %v388, %v388
        %v470 = vcombine.high %v389, %v389
        %v471 = vcombine.low %v343, %v439
        %v472 = vcombine.low %v344, %v440
        %v473 = vcombine.low %v345, %v346
        %v474 = vcombine.low %v441, %v347
        %v475 = vcombine.low %v442, %v348
        %v476 = vcombine.low %v349, %v443
        %v477 = vcombine.low %v350, %v444
        %v478 = vcombine.low %v351, %v352
        %v479 = vcombine.low %v445, %v353
        %v480 = vcombine.low %v446, %v354
        %v481 = vcombine.low %v355, %v447
        %v482 = vcombine.low %v356, %v448
        %v483 = vcombine.low %v357, %v358
        %v484 = vcombine.low %v449, %v359
        %v485 = vcombine.low %v450, %v360
        %v486 = vcombine.low %v361, %v451
        %v487 = vcombine.low %v362, %v452
        %v488 = vcombine.low %v363, %v364
        %v489 = vcombine.low %v453, %v365
        %v490 = vcombine.low %v454, %v366
        %v491 = vcombine.low %v367, %v455
        %v492 = vcombine.low %v368, %v456
        %v493 = vcombine.low %v369, %v370
        %v494 = vcombine.low %v457, %v371
        %v495 = vcombine.low %v458, %v372
        %v496 = vcombine.low %v373, %v459
        %v497 = vcombine.low %v374, %v460
        %v498 = vcombine.low %v375, %v376
        %v499 = vcombine.low %v461, %v377
        %v500 = vcombine.low %v462, %v378
        %v501 = vcombine.low %v379, %v463
        %v502 = vcombine.low %v380, %v464
        %v503 = vcombine.low %v381, %v382
        %v504 = vcombine.low %v465, %v383
        %v505 = vcombine.low %v466, %v384
        %v506 = vcombine.low %v385, %v467
        %v507 = vcombine.low %v386, %v468
        %v508 = vcombine.low %v387, %v388
        %v509 = vcombine.low %v469, %v389
        %v510 = vcombine.low %v470, %v390
        %vm511 = vcmask 130048
        %v512 = vsel %vm511, %v471, 0
        %v514 = vsel %vm511, %v472, 0
        %v516 = vsel %vm511, %v473, 0
        %v518 = vsel %vm511, %v474, 0
        %v520 = vsel %vm511, %v475, 0
        %v522 = vsel %vm511, %v476, 0
        %v524 = vsel %vm511, %v477, 0
        %v526 = vsel %vm511, %v478, 0
        %v528 = vsel %vm511, %v479, 0
        %v530 = vsel %vm511, %v480, 0
        %v532 = vsel %vm511, %v481, 0
        %v534 = vsel %vm511, %v482, 0
        %v536 = vsel %vm511, %v483, 0
        %v538 = vsel %vm511, %v484, 0
        %v540 = vsel %vm511, %v485, 0
        %v542 = vsel %vm511, %v486, 0
        %v544 = vsel %vm511, %v487, 0
        %v546 = vsel %vm511, %v488, 0
        %v548 = vsel %vm511, %v489, 0
        %v550 = vsel %vm511, %v490, 0
        %v552 = vsel %vm511, %v491, 0
        %v554 = vsel %vm511, %v492, 0
        %v556 = vsel %vm511, %v493, 0
        %v558 = vsel %vm511, %v494, 0
        %v560 = vsel %vm511, %v495, 0
        %v562 = vsel %vm511, %v496, 0
        %v564 = vsel %vm511, %v497, 0
        %v566 = vsel %vm511, %v498, 0
        %v568 = vsel %vm511, %v499, 0
        %v570 = vsel %vm511, %v500, 0
        %v572 = vsel %vm511, %v501, 0
        %v574 = vsel %vm511, %v502, 0
        %v576 = vsel %vm511, %v503, 0
        %v578 = vsel %vm511, %v504, 0
        %v580 = vsel %vm511, %v505, 0
        %v582 = vsel %vm511, %v506, 0
        %v584 = vsel %vm511, %v507, 0
        %v586 = vsel %vm511, %v508, 0
        %v588 = vsel %vm511, %v509, 0
        %v590 = vsel %vm511, %v510, 0
        %592 = vmatprep.subr.mxu0 0.0
        %593 = vmatpush1.msra.mxu0 %v333
        %594 = vmatprep.subr.mxu0 0.0
        %595 = vmatpush1.msra.mxu0 %v334
        %596 = vmatprep.subr.mxu0 0.0
        %597 = vmatpush1.msra.mxu0 0.0
        %598 = vmatprep.subr.mxu0 0.0
        %599 = vmatpush1.msra.mxu0 0.0
        %600 = vmatprep.subr.mxu0 0.0
        %601 = vmatpush1.msra.mxu0 0.0
        %602 = vmatprep.subr.mxu0 0.0
        %603 = vmatpush1.msra.mxu0 0.0
        %604 = vmatprep.subr.mxu0 0.0
        %605 = vmatpush1.msra.mxu0 0.0
        %606 = vmatprep.subr.mxu0 0.0
        %607 = vmatpush1.msra.mxu0 0.0
        %608 = vmatprep.subr.mxu0 0.0
        %609 = vmatpush1.msra.mxu0 0.0
        %610 = vmatprep.subr.mxu0 0.0
        %611 = vmatpush1.msra.mxu0 0.0
        %612 = vmatprep.subr.mxu0 0.0
        %613 = vmatpush1.msra.mxu0 0.0
        %614 = vmatprep.subr.mxu0 0.0
        %615 = vmatpush1.msra.mxu0 0.0
        %616 = vmatprep.subr.mxu0 0.0
        %617 = vmatpush1.msra.mxu0 0.0
        %618 = vmatprep.subr.mxu0 0.0
        %619 = vmatpush1.msra.mxu0 0.0
        %620 = vmatprep.subr.mxu0 0.0
        %621 = vmatpush1.msra.mxu0 0.0
        %622 = vmatprep.subr.mxu0 0.0
        %623 = vmatpush1.msra.mxu0 0.0
        %624 = vmatprep.subr.mxu0 0.0
        %625 = vmatpush1.msra.mxu0 0.0
        %626 = vmatprep.subr.mxu0 0.0
        %627 = vmatpush1.msra.mxu0 0.0
        %628 = vmatprep.subr.mxu0 0.0
        %629 = vmatpush1.msra.mxu0 0.0
        %630 = vmatprep.subr.mxu0 0.0
        %631 = vmatpush1.msra.mxu0 0.0
        %632 = vmatprep.subr.mxu0 0.0
        %633 = vmatpush1.msra.mxu0 0.0
        %634 = vmatprep.subr.mxu0 0.0
        %635 = vmatpush1.msra.mxu0 0.0
        %636 = vmatprep.subr.mxu0 0.0
        %637 = vmatpush1.msra.mxu0 0.0
        %638 = vmatprep.subr.mxu0 0.0
        %639 = vmatpush1.msra.mxu0 0.0
        %640 = vmatprep.subr.mxu0 0.0
        %641 = vmatpush1.msra.mxu0 0.0
        %642 = vmatprep.subr.mxu0 0.0
        %643 = vmatpush1.msra.mxu0 0.0
        %644 = vmatprep.subr.mxu0 0.0
        %645 = vmatpush1.msra.mxu0 0.0
        %646 = vmatprep.subr.mxu0 0.0
        %647 = vmatpush1.msra.mxu0 0.0
        %648 = vmatprep.subr.mxu0 0.0
        %649 = vmatpush1.msra.mxu0 0.0
        %650 = vmatprep.subr.mxu0 0.0
        %651 = vmatpush1.msra.mxu0 0.0
        %652 = vmatprep.subr.mxu0 0.0
        %653 = vmatpush1.msra.mxu0 0.0
        %654 = vmatprep.subr.mxu0 0.0
        %655 = vmatpush1.msra.mxu0 0.0
        %656 = vmatprep.mubr.f32.mxu0 0.0
        %657 = vmatmul.mubr.f32.gmra.mrb[0].mxu0 %v512
        %v658 = vpop.f32.mrb[0].mxu0
        %v659 = vadd.f32 0.0, %v658
        %v660 = vpop.f32.mrb[0].mxu0
        %661 = vmatprep.mubr.f32.mxu0 0.0
        %662 = vmatmul.mubr.f32.gmra.mrb[0].mxu0 %v514
        %v663 = vpop.f32.mrb[0].mxu0
        %v664 = vadd.f32 0.0, %v663
        %v665 = vpop.f32.mrb[0].mxu0
        %666 = vmatprep.mubr.f32.mxu0 0.0
        %667 = vmatmul.mubr.f32.gmra.mrb[0].mxu0 %v516
        %v668 = vpop.f32.mrb[0].mxu0
        %v669 = vadd.f32 0.0, %v668
        %v670 = vpop.f32.mrb[0].mxu0
        %671 = vmatprep.mubr.f32.mxu0 0.0
        %672 = vmatmul.mubr.f32.gmra.mrb[0].mxu0 %v518
        %v673 = vpop.f32.mrb[0].mxu0
        %v674 = vadd.f32 0.0, %v673
        %v675 = vpop.f32.mrb[0].mxu0
        %676 = vmatprep.mubr.f32.mxu0 0.0
        %677 = vmatmul.mubr.f32.gmra.mrb[0].mxu0 %v520
        %v678 = vpop.f32.mrb[0].mxu0
        %v679 = vadd.f32 0.0, %v678
        %v680 = vpop.f32.mrb[0].mxu0
        %681 = vmatprep.mubr.f32.mxu0 0.0
        %682 = vmatmul.mubr.f32.gmra.mrb[0].mxu0 %v522
        %v683 = vpop.f32.mrb[0].mxu0
        %v684 = vadd.f32 0.0, %v683
        %v685 = vpop.f32.mrb[0].mxu0
        %686 = vmatprep.mubr.f32.mxu0 0.0
        %687 = vmatmul.mubr.f32.gmra.mrb[0].mxu0 %v524
        %v688 = vpop.f32.mrb[0].mxu0
        %v689 = vadd.f32 0.0, %v688
        %v690 = vpop.f32.mrb[0].mxu0
        %691 = vmatprep.mubr.f32.mxu0 0.0
        %692 = vmatmul.mubr.f32.gmra.mrb[0].mxu0 %v526
        %v693 = vpop.f32.mrb[0].mxu0
        %v694 = vadd.f32 0.0, %v693
        %v695 = vpop.f32.mrb[0].mxu0
        %696 = vmatprep.mubr.f32.mxu0 0.0
        %697 = vmatmul.mubr.f32.gmra.mrb[0].mxu0 %v528
        %v698 = vpop.f32.mrb[0].mxu0
        %v699 = vadd.f32 0.0, %v698
        %v700 = vpop.f32.mrb[0].mxu0
        %701 = vmatprep.mubr.f32.mxu0 0.0
        %702 = vmatmul.mubr.f32.gmra.mrb[0].mxu0 %v530
        %v703 = vpop.f32.mrb[0].mxu0
        %v704 = vadd.f32 0.0, %v703
        %v705 = vpop.f32.mrb[0].mxu0
        %706 = vmatprep.mubr.f32.mxu0 0.0
        %707 = vmatmul.mubr.f32.gmra.mrb[0].mxu0 %v532
        %v708 = vpop.f32.mrb[0].mxu0
        %v709 = vadd.f32 0.0, %v708
        %v710 = vpop.f32.mrb[0].mxu0
        %711 = vmatprep.mubr.f32.mxu0 0.0
        %712 = vmatmul.mubr.f32.gmra.mrb[0].mxu0 %v534
        %v713 = vpop.f32.mrb[0].mxu0
        %v714 = vadd.f32 0.0, %v713
        %v715 = vpop.f32.mrb[0].mxu0
        %716 = vmatprep.mubr.f32.mxu0 0.0
        %717 = vmatmul.mubr.f32.gmra.mrb[0].mxu0 %v536
        %v718 = vpop.f32.mrb[0].mxu0
        %v719 = vadd.f32 0.0, %v718
        %v720 = vpop.f32.mrb[0].mxu0
        %721 = vmatprep.mubr.f32.mxu0 0.0
        %722 = vmatmul.mubr.f32.gmra.mrb[0].mxu0 %v538
        %v723 = vpop.f32.mrb[0].mxu0
        %v724 = vadd.f32 0.0, %v723
        %v725 = vpop.f32.mrb[0].mxu0
        %726 = vmatprep.mubr.f32.mxu0 0.0
        %727 = vmatmul.mubr.f32.gmra.mrb[0].mxu0 %v540
        %v728 = vpop.f32.mrb[0].mxu0
        %v729 = vadd.f32 0.0, %v728
        %v730 = vpop.f32.mrb[0].mxu0
        %731 = vmatprep.mubr.f32.mxu0 0.0
        %732 = vmatmul.mubr.f32.gmra.mrb[0].mxu0 %v542
        %v733 = vpop.f32.mrb[0].mxu0
        %v734 = vadd.f32 0.0, %v733
        %v735 = vpop.f32.mrb[0].mxu0
        %736 = vmatprep.mubr.f32.mxu0 0.0
        %737 = vmatmul.mubr.f32.gmra.mrb[0].mxu0 %v544
        %v738 = vpop.f32.mrb[0].mxu0
        %v739 = vadd.f32 0.0, %v738
        %v740 = vpop.f32.mrb[0].mxu0
        %741 = vmatprep.mubr.f32.mxu0 0.0
        %742 = vmatmul.mubr.f32.gmra.mrb[0].mxu0 %v546
        %v743 = vpop.f32.mrb[0].mxu0
        %v744 = vadd.f32 0.0, %v743
        %v745 = vpop.f32.mrb[0].mxu0
        %746 = vmatprep.mubr.f32.mxu0 0.0
        %747 = vmatmul.mubr.f32.gmra.mrb[0].mxu0 %v548
        %v748 = vpop.f32.mrb[0].mxu0
        %v749 = vadd.f32 0.0, %v748
        %v750 = vpop.f32.mrb[0].mxu0
        %751 = vmatprep.mubr.f32.mxu0 0.0
        %752 = vmatmul.mubr.f32.gmra.mrb[0].mxu0 %v550
        %v753 = vpop.f32.mrb[0].mxu0
        %v754 = vadd.f32 0.0, %v753
        %v755 = vpop.f32.mrb[0].mxu0
        %756 = vmatprep.mubr.f32.mxu0 0.0
        %757 = vmatmul.mubr.f32.gmra.mrb[0].mxu0 %v552
        %v758 = vpop.f32.mrb[0].mxu0
        %v759 = vadd.f32 0.0, %v758
        %v760 = vpop.f32.mrb[0].mxu0
        %761 = vmatprep.mubr.f32.mxu0 0.0
        %762 = vmatmul.mubr.f32.gmra.mrb[0].mxu0 %v554
        %v763 = vpop.f32.mrb[0].mxu0
        %v764 = vadd.f32 0.0, %v763
        %v765 = vpop.f32.mrb[0].mxu0
        %766 = vmatprep.mubr.f32.mxu0 0.0
        %767 = vmatmul.mubr.f32.gmra.mrb[0].mxu0 %v556
        %v768 = vpop.f32.mrb[0].mxu0
        %v769 = vadd.f32 0.0, %v768
        %v770 = vpop.f32.mrb[0].mxu0
        %771 = vmatprep.mubr.f32.mxu0 0.0
        %772 = vmatmul.mubr.f32.gmra.mrb[0].mxu0 %v558
        %v773 = vpop.f32.mrb[0].mxu0
        %v774 = vadd.f32 0.0, %v773
        %v775 = vpop.f32.mrb[0].mxu0
        %776 = vmatprep.mubr.f32.mxu0 0.0
        %777 = vmatmul.mubr.f32.gmra.mrb[0].mxu0 %v560
        %v778 = vpop.f32.mrb[0].mxu0
        %v779 = vadd.f32 0.0, %v778
        %v780 = vpop.f32.mrb[0].mxu0
        %781 = vmatprep.mubr.f32.mxu0 0.0
        %782 = vmatmul.mubr.f32.gmra.mrb[0].mxu0 %v562
        %v783 = vpop.f32.mrb[0].mxu0
        %v784 = vadd.f32 0.0, %v783
        %v785 = vpop.f32.mrb[0].mxu0
        %786 = vmatprep.mubr.f32.mxu0 0.0
        %787 = vmatmul.mubr.f32.gmra.mrb[0].mxu0 %v564
        %v788 = vpop.f32.mrb[0].mxu0
        %v789 = vadd.f32 0.0, %v788
        %v790 = vpop.f32.mrb[0].mxu0
        %791 = vmatprep.mubr.f32.mxu0 0.0
        %792 = vmatmul.mubr.f32.gmra.mrb[0].mxu0 %v566
        %v793 = vpop.f32.mrb[0].mxu0
        %v794 = vadd.f32 0.0, %v793
        %v795 = vpop.f32.mrb[0].mxu0
        %796 = vmatprep.mubr.f32.mxu0 0.0
        %797 = vmatmul.mubr.f32.gmra.mrb[0].mxu0 %v568
        %v798 = vpop.f32.mrb[0].mxu0
        %v799 = vadd.f32 0.0, %v798
        %v800 = vpop.f32.mrb[0].mxu0
        %801 = vmatprep.mubr.f32.mxu0 0.0
        %802 = vmatmul.mubr.f32.gmra.mrb[0].mxu0 %v570
        %v803 = vpop.f32.mrb[0].mxu0
        %v804 = vadd.f32 0.0, %v803
        %v805 = vpop.f32.mrb[0].mxu0
        %806 = vmatprep.mubr.f32.mxu0 0.0
        %807 = vmatmul.mubr.f32.gmra.mrb[0].mxu0 %v572
        %v808 = vpop.f32.mrb[0].mxu0
        %v809 = vadd.f32 0.0, %v808
        %v810 = vpop.f32.mrb[0].mxu0
        %811 = vmatprep.mubr.f32.mxu0 0.0
        %812 = vmatmul.mubr.f32.gmra.mrb[0].mxu0 %v574
        %v813 = vpop.f32.mrb[0].mxu0
        %v814 = vadd.f32 0.0, %v813
        %v815 = vpop.f32.mrb[0].mxu0
        %816 = vmatprep.mubr.f32.mxu0 0.0
        %817 = vmatmul.mubr.f32.gmra.mrb[0].mxu0 %v576
        %v818 = vpop.f32.mrb[0].mxu0
        %v819 = vadd.f32 0.0, %v818
        %v820 = vpop.f32.mrb[0].mxu0
        %821 = vmatprep.mubr.f32.mxu0 0.0
        %822 = vmatmul.mubr.f32.gmra.mrb[0].mxu0 %v578
        %v823 = vpop.f32.mrb[0].mxu0
        %v824 = vadd.f32 0.0, %v823
        %v825 = vpop.f32.mrb[0].mxu0
        %826 = vmatprep.mubr.f32.mxu0 0.0
        %827 = vmatmul.mubr.f32.gmra.mrb[0].mxu0 %v580
        %v828 = vpop.f32.mrb[0].mxu0
        %v829 = vadd.f32 0.0, %v828
        %v830 = vpop.f32.mrb[0].mxu0
        %831 = vmatprep.mubr.f32.mxu0 0.0
        %832 = vmatmul.mubr.f32.gmra.mrb[0].mxu0 %v582
        %v833 = vpop.f32.mrb[0].mxu0
        %v834 = vadd.f32 0.0, %v833
        %v835 = vpop.f32.mrb[0].mxu0
        %836 = vmatprep.mubr.f32.mxu0 0.0
        %837 = vmatmul.mubr.f32.gmra.mrb[0].mxu0 %v584
        %v838 = vpop.f32.mrb[0].mxu0
        %v839 = vadd.f32 0.0, %v838
        %v840 = vpop.f32.mrb[0].mxu0
        %841 = vmatprep.mubr.f32.mxu0 0.0
        %842 = vmatmul.mubr.f32.gmra.mrb[0].mxu0 %v586
        %v843 = vpop.f32.mrb[0].mxu0
        %v844 = vadd.f32 0.0, %v843
        %v845 = vpop.f32.mrb[0].mxu0
        %846 = vmatprep.mubr.f32.mxu0 0.0
        %847 = vmatmul.mubr.f32.gmra.mrb[0].mxu0 %v588
        %v848 = vpop.f32.mrb[0].mxu0
        %v849 = vadd.f32 0.0, %v848
        %v850 = vpop.f32.mrb[0].mxu0
        %851 = vmatprep.mubr.f32.mxu0 0.0
        %852 = vmatmul.mubr.f32.gmra.mrb[0].mxu0 %v590
        %v853 = vpop.f32.mrb[0].mxu0
        %v854 = vadd.f32 0.0, %v853
        %v855 = vpop.f32.mrb[0].mxu0
        %856 = vdwg.mxu0
        %v897 = vcombine.high %v659, %v659
        %v898 = vcombine.high %v664, %v664
        %v899 = vcombine.high %v669, %v669
        %v900 = vcombine.high %v674, %v674
        %v901 = vcombine.high %v679, %v679
        %v902 = vcombine.high %v684, %v684
        %v903 = vcombine.high %v689, %v689
        %v904 = vcombine.high %v694, %v694
        %v905 = vcombine.high %v699, %v699
        %v906 = vcombine.high %v704, %v704
        %v907 = vcombine.high %v709, %v709
        %v908 = vcombine.high %v714, %v714
        %v909 = vcombine.high %v719, %v719
        %v910 = vcombine.high %v724, %v724
        %v911 = vcombine.high %v729, %v729
        %v912 = vcombine.high %v734, %v734
        %v913 = vcombine.high %v739, %v739
        %v914 = vcombine.high %v744, %v744
        %v915 = vcombine.high %v749, %v749
        %v916 = vcombine.high %v754, %v754
        %v917 = vcombine.high %v759, %v759
        %v918 = vcombine.high %v764, %v764
        %v919 = vcombine.high %v769, %v769
        %v920 = vcombine.high %v774, %v774
        %v921 = vcombine.high %v779, %v779
        %v922 = vcombine.high %v784, %v784
        %v923 = vcombine.high %v789, %v789
        %v924 = vcombine.high %v794, %v794
        %v925 = vcombine.high %v799, %v799
        %v926 = vcombine.high %v804, %v804
        %v927 = vcombine.high %v809, %v809
        %v928 = vcombine.high %v814, %v814
        %v929 = vcombine.high %v819, %v819
        %v930 = vcombine.high %v824, %v824
        %v931 = vcombine.high %v829, %v829
        %v932 = vcombine.high %v834, %v834
        %v933 = vcombine.high %v839, %v839
        %v934 = vcombine.high %v844, %v844
        %v935 = vcombine.high %v849, %v849
        %v936 = vcombine.high %v854, %v854
        %vm977 = vcmask 1042432
        %vm978 = vcmask 1046532
        %vm979 = vmor %vm977, %vm978
        %v980 = vrot.slane %v659, 5
        %v981 = vrot.slane %v980, 4
        %v982 = vrot.slane %v897, 5
        %v983 = vsel %vm979, %v981, %v982
        %v984 = vrot.slane %v982, 4
        %v985 = vrot.slane %v664, 5
        %v986 = vsel %vm979, %v984, %v985
        %v987 = vrot.slane %v985, 4
        %v988 = vrot.slane %v898, 5
        %v989 = vsel %vm979, %v987, %v988
        %v990 = vrot.slane %v988, 4
        %v991 = vrot.slane %v669, 5
        %v992 = vsel %vm979, %v990, %v991
        %v993 = vrot.slane %v899, 5
        %v994 = vrot.slane %v993, 4
        %v995 = vrot.slane %v674, 5
        %v996 = vsel %vm979, %v994, %v995
        %v997 = vrot.slane %v995, 4
        %v998 = vrot.slane %v900, 5
        %v999 = vsel %vm979, %v997, %v998
        %v1000 = vrot.slane %v998, 4
        %v1001 = vrot.slane %v679, 5
        %v1002 = vsel %vm979, %v1000, %v1001
        %v1003 = vrot.slane %v1001, 4
        %v1004 = vrot.slane %v901, 5
        %v1005 = vsel %vm979, %v1003, %v1004
        %v1006 = vrot.slane %v684, 5
        %v1007 = vrot.slane %v1006, 4
        %v1008 = vrot.slane %v902, 5
        %v1009 = vsel %vm979, %v1007, %v1008
        %v1010 = vrot.slane %v1008, 4
        %v1011 = vrot.slane %v689, 5
        %v1012 = vsel %vm979, %v1010, %v1011
        %v1013 = vrot.slane %v1011, 4
        %v1014 = vrot.slane %v903, 5
        %v1015 = vsel %vm979, %v1013, %v1014
        %v1016 = vrot.slane %v1014, 4
        %v1017 = vrot.slane %v694, 5
        %v1018 = vsel %vm979, %v1016, %v1017
        %v1019 = vrot.slane %v904, 5
        %v1020 = vrot.slane %v1019, 4
        %v1021 = vrot.slane %v699, 5
        %v1022 = vsel %vm979, %v1020, %v1021
        %v1023 = vrot.slane %v1021, 4
        %v1024 = vrot.slane %v905, 5
        %v1025 = vsel %vm979, %v1023, %v1024
        %v1026 = vrot.slane %v1024, 4
        %v1027 = vrot.slane %v704, 5
        %v1028 = vsel %vm979, %v1026, %v1027
        %v1029 = vrot.slane %v1027, 4
        %v1030 = vrot.slane %v906, 5
        %v1031 = vsel %vm979, %v1029, %v1030
        %v1032 = vrot.slane %v709, 5
        %v1033 = vrot.slane %v1032, 4
        %v1034 = vrot.slane %v907, 5
        %v1035 = vsel %vm979, %v1033, %v1034
        %v1036 = vrot.slane %v1034, 4
        %v1037 = vrot.slane %v714, 5
        %v1038 = vsel %vm979, %v1036, %v1037
        %v1039 = vrot.slane %v1037, 4
        %v1040 = vrot.slane %v908, 5
        %v1041 = vsel %vm979, %v1039, %v1040
        %v1042 = vrot.slane %v1040, 4
        %v1043 = vrot.slane %v719, 5
        %v1044 = vsel %vm979, %v1042, %v1043
        %v1045 = vrot.slane %v909, 5
        %v1046 = vrot.slane %v1045, 4
        %v1047 = vrot.slane %v724, 5
        %v1048 = vsel %vm979, %v1046, %v1047
        %v1049 = vrot.slane %v1047, 4
        %v1050 = vrot.slane %v910, 5
        %v1051 = vsel %vm979, %v1049, %v1050
        %v1052 = vrot.slane %v1050, 4
        %v1053 = vrot.slane %v729, 5
        %v1054 = vsel %vm979, %v1052, %v1053
        %v1055 = vrot.slane %v1053, 4
        %v1056 = vrot.slane %v911, 5
        %v1057 = vsel %vm979, %v1055, %v1056
        %v1058 = vrot.slane %v734, 5
        %v1059 = vrot.slane %v1058, 4
        %v1060 = vrot.slane %v912, 5
        %v1061 = vsel %vm979, %v1059, %v1060
        %v1062 = vrot.slane %v1060, 4
        %v1063 = vrot.slane %v739, 5
        %v1064 = vsel %vm979, %v1062, %v1063
        %v1065 = vrot.slane %v1063, 4
        %v1066 = vrot.slane %v913, 5
        %v1067 = vsel %vm979, %v1065, %v1066
        %v1068 = vrot.slane %v1066, 4
        %v1069 = vrot.slane %v744, 5
        %v1070 = vsel %vm979, %v1068, %v1069
        %v1071 = vrot.slane %v914, 5
        %v1072 = vrot.slane %v1071, 4
        %v1073 = vrot.slane %v749, 5
        %v1074 = vsel %vm979, %v1072, %v1073
        %v1075 = vrot.slane %v1073, 4
        %v1076 = vrot.slane %v915, 5
        %v1077 = vsel %vm979, %v1075, %v1076
        %v1078 = vrot.slane %v1076, 4
        %v1079 = vrot.slane %v754, 5
        %v1080 = vsel %vm979, %v1078, %v1079
        %v1081 = vrot.slane %v1079, 4
        %v1082 = vrot.slane %v916, 5
        %v1083 = vsel %vm979, %v1081, %v1082
        %v1084 = vrot.slane %v759, 5
        %v1085 = vrot.slane %v1084, 4
        %v1086 = vrot.slane %v917, 5
        %v1087 = vsel %vm979, %v1085, %v1086
        %v1088 = vrot.slane %v1086, 4
        %v1089 = vrot.slane %v764, 5
        %v1090 = vsel %vm979, %v1088, %v1089
        %v1091 = vrot.slane %v1089, 4
        %v1092 = vrot.slane %v918, 5
        %v1093 = vsel %vm979, %v1091, %v1092
        %v1094 = vrot.slane %v1092, 4
        %v1095 = vrot.slane %v769, 5
        %v1096 = vsel %vm979, %v1094, %v1095
        %v1097 = vrot.slane %v919, 5
        %v1098 = vrot.slane %v1097, 4
        %v1099 = vrot.slane %v774, 5
        %v1100 = vsel %vm979, %v1098, %v1099
        %v1101 = vrot.slane %v1099, 4
        %v1102 = vrot.slane %v920, 5
        %v1103 = vsel %vm979, %v1101, %v1102
        %v1104 = vrot.slane %v1102, 4
        %v1105 = vrot.slane %v779, 5
        %v1106 = vsel %vm979, %v1104, %v1105
        %v1107 = vrot.slane %v1105, 4
        %v1108 = vrot.slane %v921, 5
        %v1109 = vsel %vm979, %v1107, %v1108
        %v1110 = vrot.slane %v784, 5
        %v1111 = vrot.slane %v1110, 4
        %v1112 = vrot.slane %v922, 5
        %v1113 = vsel %vm979, %v1111, %v1112
        %v1114 = vrot.slane %v1112, 4
        %v1115 = vrot.slane %v789, 5
        %v1116 = vsel %vm979, %v1114, %v1115
        %v1117 = vrot.slane %v1115, 4
        %v1118 = vrot.slane %v923, 5
        %v1119 = vsel %vm979, %v1117, %v1118
        %v1120 = vrot.slane %v1118, 4
        %v1121 = vrot.slane %v794, 5
        %v1122 = vsel %vm979, %v1120, %v1121
        %v1123 = vrot.slane %v924, 5
        %v1124 = vrot.slane %v1123, 4
        %v1125 = vrot.slane %v799, 5
        %v1126 = vsel %vm979, %v1124, %v1125
        %v1127 = vrot.slane %v1125, 4
        %v1128 = vrot.slane %v925, 5
        %v1129 = vsel %vm979, %v1127, %v1128
        %v1130 = vrot.slane %v1128, 4
        %v1131 = vrot.slane %v804, 5
        %v1132 = vsel %vm979, %v1130, %v1131
        %v1133 = vrot.slane %v1131, 4
        %v1134 = vrot.slane %v926, 5
        %v1135 = vsel %vm979, %v1133, %v1134
        %v1136 = vrot.slane %v809, 5
        %v1137 = vrot.slane %v1136, 4
        %v1138 = vrot.slane %v927, 5
        %v1139 = vsel %vm979, %v1137, %v1138
        %v1140 = vrot.slane %v1138, 4
        %v1141 = vrot.slane %v814, 5
        %v1142 = vsel %vm979, %v1140, %v1141
        %v1143 = vrot.slane %v1141, 4
        %v1144 = vrot.slane %v928, 5
        %v1145 = vsel %vm979, %v1143, %v1144
        %v1146 = vrot.slane %v1144, 4
        %v1147 = vrot.slane %v819, 5
        %v1148 = vsel %vm979, %v1146, %v1147
        %v1149 = vrot.slane %v929, 5
        %v1150 = vrot.slane %v1149, 4
        %v1151 = vrot.slane %v824, 5
        %v1152 = vsel %vm979, %v1150, %v1151
        %v1153 = vrot.slane %v1151, 4
        %v1154 = vrot.slane %v930, 5
        %v1155 = vsel %vm979, %v1153, %v1154
        %v1156 = vrot.slane %v1154, 4
        %v1157 = vrot.slane %v829, 5
        %v1158 = vsel %vm979, %v1156, %v1157
        %v1159 = vrot.slane %v1157, 4
        %v1160 = vrot.slane %v931, 5
        %v1161 = vsel %vm979, %v1159, %v1160
        %v1162 = vrot.slane %v834, 5
        %v1163 = vrot.slane %v1162, 4
        %v1164 = vrot.slane %v932, 5
        %v1165 = vsel %vm979, %v1163, %v1164
        %v1166 = vrot.slane %v1164, 4
        %v1167 = vrot.slane %v839, 5
        %v1168 = vsel %vm979, %v1166, %v1167
        %v1169 = vrot.slane %v1167, 4
        %v1170 = vrot.slane %v933, 5
        %v1171 = vsel %vm979, %v1169, %v1170
        %v1172 = vrot.slane %v1170, 4
        %v1173 = vrot.slane %v844, 5
        %v1174 = vsel %vm979, %v1172, %v1173
        %v1175 = vrot.slane %v934, 5
        %v1176 = vrot.slane %v1175, 4
        %v1177 = vrot.slane %v849, 5
        %v1178 = vsel %vm979, %v1176, %v1177
        %v1179 = vrot.slane %v1177, 4
        %v1180 = vrot.slane %v935, 5
        %v1181 = vsel %vm979, %v1179, %v1180
        %v1182 = vrot.slane %v1180, 4
        %v1183 = vrot.slane %v854, 5
        %v1184 = vsel %vm979, %v1182, %v1183
        %v1185 = vrot.slane %v1183, 4
        %v1186 = vrot.slane %v936, 5
        %v1187 = vsel %vm979, %v1185, %v1186
        %v1252 = vadd.f32 %v659, %v983
        %v1253 = vadd.f32 %v897, %v986
        %v1254 = vadd.f32 %v664, %v989
        %v1255 = vadd.f32 %v898, %v992
        %v1256 = vadd.f32 %v899, %v996
        %v1257 = vadd.f32 %v674, %v999
        %v1258 = vadd.f32 %v900, %v1002
        %v1259 = vadd.f32 %v679, %v1005
        %v1260 = vadd.f32 %v684, %v1009
        %v1261 = vadd.f32 %v902, %v1012
        %v1262 = vadd.f32 %v689, %v1015
        %v1263 = vadd.f32 %v903, %v1018
        %v1264 = vadd.f32 %v904, %v1022
        %v1265 = vadd.f32 %v699, %v1025
        %v1266 = vadd.f32 %v905, %v1028
        %v1267 = vadd.f32 %v704, %v1031
        %v1268 = vadd.f32 %v709, %v1035
        %v1269 = vadd.f32 %v907, %v1038
        %v1270 = vadd.f32 %v714, %v1041
        %v1271 = vadd.f32 %v908, %v1044
        %v1272 = vadd.f32 %v909, %v1048
        %v1273 = vadd.f32 %v724, %v1051
        %v1274 = vadd.f32 %v910, %v1054
        %v1275 = vadd.f32 %v729, %v1057
        %v1276 = vadd.f32 %v734, %v1061
        %v1277 = vadd.f32 %v912, %v1064
        %v1278 = vadd.f32 %v739, %v1067
        %v1279 = vadd.f32 %v913, %v1070
        %v1280 = vadd.f32 %v914, %v1074
        %v1281 = vadd.f32 %v749, %v1077
        %v1282 = vadd.f32 %v915, %v1080
        %v1283 = vadd.f32 %v754, %v1083
        %v1284 = vadd.f32 %v759, %v1087
        %v1285 = vadd.f32 %v917, %v1090
        %v1286 = vadd.f32 %v764, %v1093
        %v1287 = vadd.f32 %v918, %v1096
        %v1288 = vadd.f32 %v919, %v1100
        %v1289 = vadd.f32 %v774, %v1103
        %v1290 = vadd.f32 %v920, %v1106
        %v1291 = vadd.f32 %v779, %v1109
        %v1292 = vadd.f32 %v784, %v1113
        %v1293 = vadd.f32 %v922, %v1116
        %v1294 = vadd.f32 %v789, %v1119
        %v1295 = vadd.f32 %v923, %v1122
        %v1296 = vadd.f32 %v924, %v1126
        %v1297 = vadd.f32 %v799, %v1129
        %v1298 = vadd.f32 %v925, %v1132
        %v1299 = vadd.f32 %v804, %v1135
        %v1300 = vadd.f32 %v809, %v1139
        %v1301 = vadd.f32 %v927, %v1142
        %v1302 = vadd.f32 %v814, %v1145
        %v1303 = vadd.f32 %v928, %v1148
        %v1304 = vadd.f32 %v929, %v1152
        %v1305 = vadd.f32 %v824, %v1155
        %v1306 = vadd.f32 %v930, %v1158
        %v1307 = vadd.f32 %v829, %v1161
        %v1308 = vadd.f32 %v834, %v1165
        %v1309 = vadd.f32 %v932, %v1168
        %v1310 = vadd.f32 %v839, %v1171
        %v1311 = vadd.f32 %v933, %v1174
        %v1312 = vadd.f32 %v934, %v1178
        %v1313 = vadd.f32 %v849, %v1181
        %v1314 = vadd.f32 %v935, %v1184
        %v1315 = vadd.f32 %v854, %v1187
        %vm1316 = vcmask 1041408
        %vm1317 = vcmask 1045508
        %vm1318 = vmor %vm1316, %vm1317
        %v1319 = vrot.slane %v659, 6
        %v1320 = vrot.slane %v1319, 4
        %v1321 = vrot.slane %v897, 6
        %v1322 = vsel %vm1318, %v1320, %v1321
        %v1323 = vrot.slane %v1321, 4
        %v1324 = vrot.slane %v664, 6
        %v1325 = vsel %vm1318, %v1323, %v1324
        %v1326 = vrot.slane %v1324, 4
        %v1327 = vrot.slane %v898, 6
        %v1328 = vsel %vm1318, %v1326, %v1327
        %v1329 = vrot.slane %v1327, 4
        %v1330 = vrot.slane %v669, 6
        %v1331 = vsel %vm1318, %v1329, %v1330
        %v1332 = vrot.slane %v899, 6
        %v1333 = vrot.slane %v1332, 4
        %v1334 = vrot.slane %v674, 6
        %v1335 = vsel %vm1318, %v1333, %v1334
        %v1336 = vrot.slane %v1334, 4
        %v1337 = vrot.slane %v900, 6
        %v1338 = vsel %vm1318, %v1336, %v1337
        %v1339 = vrot.slane %v1337, 4
        %v1340 = vrot.slane %v679, 6
        %v1341 = vsel %vm1318, %v1339, %v1340
        %v1342 = vrot.slane %v1340, 4
        %v1343 = vrot.slane %v901, 6
        %v1344 = vsel %vm1318, %v1342, %v1343
        %v1345 = vrot.slane %v684, 6
        %v1346 = vrot.slane %v1345, 4
        %v1347 = vrot.slane %v902, 6
        %v1348 = vsel %vm1318, %v1346, %v1347
        %v1349 = vrot.slane %v1347, 4
        %v1350 = vrot.slane %v689, 6
        %v1351 = vsel %vm1318, %v1349, %v1350
        %v1352 = vrot.slane %v1350, 4
        %v1353 = vrot.slane %v903, 6
        %v1354 = vsel %vm1318, %v1352, %v1353
        %v1355 = vrot.slane %v1353, 4
        %v1356 = vrot.slane %v694, 6
        %v1357 = vsel %vm1318, %v1355, %v1356
        %v1358 = vrot.slane %v904, 6
        %v1359 = vrot.slane %v1358, 4
        %v1360 = vrot.slane %v699, 6
        %v1361 = vsel %vm1318, %v1359, %v1360
        %v1362 = vrot.slane %v1360, 4
        %v1363 = vrot.slane %v905, 6
        %v1364 = vsel %vm1318, %v1362, %v1363
        %v1365 = vrot.slane %v1363, 4
        %v1366 = vrot.slane %v704, 6
        %v1367 = vsel %vm1318, %v1365, %v1366
        %v1368 = vrot.slane %v1366, 4
        %v1369 = vrot.slane %v906, 6
        %v1370 = vsel %vm1318, %v1368, %v1369
        %v1371 = vrot.slane %v709, 6
        %v1372 = vrot.slane %v1371, 4
        %v1373 = vrot.slane %v907, 6
        %v1374 = vsel %vm1318, %v1372, %v1373
        %v1375 = vrot.slane %v1373, 4
        %v1376 = vrot.slane %v714, 6
        %v1377 = vsel %vm1318, %v1375, %v1376
        %v1378 = vrot.slane %v1376, 4
        %v1379 = vrot.slane %v908, 6
        %v1380 = vsel %vm1318, %v1378, %v1379
        %v1381 = vrot.slane %v1379, 4
        %v1382 = vrot.slane %v719, 6
        %v1383 = vsel %vm1318, %v1381, %v1382
        %v1384 = vrot.slane %v909, 6
        %v1385 = vrot.slane %v1384, 4
        %v1386 = vrot.slane %v724, 6
        %v1387 = vsel %vm1318, %v1385, %v1386
        %v1388 = vrot.slane %v1386, 4
        %v1389 = vrot.slane %v910, 6
        %v1390 = vsel %vm1318, %v1388, %v1389
        %v1391 = vrot.slane %v1389, 4
        %v1392 = vrot.slane %v729, 6
        %v1393 = vsel %vm1318, %v1391, %v1392
        %v1394 = vrot.slane %v1392, 4
        %v1395 = vrot.slane %v911, 6
        %v1396 = vsel %vm1318, %v1394, %v1395
        %v1397 = vrot.slane %v734, 6
        %v1398 = vrot.slane %v1397, 4
        %v1399 = vrot.slane %v912, 6
        %v1400 = vsel %vm1318, %v1398, %v1399
        %v1401 = vrot.slane %v1399, 4
        %v1402 = vrot.slane %v739, 6
        %v1403 = vsel %vm1318, %v1401, %v1402
        %v1404 = vrot.slane %v1402, 4
        %v1405 = vrot.slane %v913, 6
        %v1406 = vsel %vm1318, %v1404, %v1405
        %v1407 = vrot.slane %v1405, 4
        %v1408 = vrot.slane %v744, 6
        %v1409 = vsel %vm1318, %v1407, %v1408
        %v1410 = vrot.slane %v914, 6
        %v1411 = vrot.slane %v1410, 4
        %v1412 = vrot.slane %v749, 6
        %v1413 = vsel %vm1318, %v1411, %v1412
        %v1414 = vrot.slane %v1412, 4
        %v1415 = vrot.slane %v915, 6
        %v1416 = vsel %vm1318, %v1414, %v1415
        %v1417 = vrot.slane %v1415, 4
        %v1418 = vrot.slane %v754, 6
        %v1419 = vsel %vm1318, %v1417, %v1418
        %v1420 = vrot.slane %v1418, 4
        %v1421 = vrot.slane %v916, 6
        %v1422 = vsel %vm1318, %v1420, %v1421
        %v1423 = vrot.slane %v759, 6
        %v1424 = vrot.slane %v1423, 4
        %v1425 = vrot.slane %v917, 6
        %v1426 = vsel %vm1318, %v1424, %v1425
        %v1427 = vrot.slane %v1425, 4
        %v1428 = vrot.slane %v764, 6
        %v1429 = vsel %vm1318, %v1427, %v1428
        %v1430 = vrot.slane %v1428, 4
        %v1431 = vrot.slane %v918, 6
        %v1432 = vsel %vm1318, %v1430, %v1431
        %v1433 = vrot.slane %v1431, 4
        %v1434 = vrot.slane %v769, 6
        %v1435 = vsel %vm1318, %v1433, %v1434
        %v1436 = vrot.slane %v919, 6
        %v1437 = vrot.slane %v1436, 4
        %v1438 = vrot.slane %v774, 6
        %v1439 = vsel %vm1318, %v1437, %v1438
        %v1440 = vrot.slane %v1438, 4
        %v1441 = vrot.slane %v920, 6
        %v1442 = vsel %vm1318, %v1440, %v1441
        %v1443 = vrot.slane %v1441, 4
        %v1444 = vrot.slane %v779, 6
        %v1445 = vsel %vm1318, %v1443, %v1444
        %v1446 = vrot.slane %v1444, 4
        %v1447 = vrot.slane %v921, 6
        %v1448 = vsel %vm1318, %v1446, %v1447
        %v1449 = vrot.slane %v784, 6
        %v1450 = vrot.slane %v1449, 4
        %v1451 = vrot.slane %v922, 6
        %v1452 = vsel %vm1318, %v1450, %v1451
        %v1453 = vrot.slane %v1451, 4
        %v1454 = vrot.slane %v789, 6
        %v1455 = vsel %vm1318, %v1453, %v1454
        %v1456 = vrot.slane %v1454, 4
        %v1457 = vrot.slane %v923, 6
        %v1458 = vsel %vm1318, %v1456, %v1457
        %v1459 = vrot.slane %v1457, 4
        %v1460 = vrot.slane %v794, 6
        %v1461 = vsel %vm1318, %v1459, %v1460
        %v1462 = vrot.slane %v924, 6
        %v1463 = vrot.slane %v1462, 4
        %v1464 = vrot.slane %v799, 6
        %v1465 = vsel %vm1318, %v1463, %v1464
        %v1466 = vrot.slane %v1464, 4
        %v1467 = vrot.slane %v925, 6
        %v1468 = vsel %vm1318, %v1466, %v1467
        %v1469 = vrot.slane %v1467, 4
        %v1470 = vrot.slane %v804, 6
        %v1471 = vsel %vm1318, %v1469, %v1470
        %v1472 = vrot.slane %v1470, 4
        %v1473 = vrot.slane %v926, 6
        %v1474 = vsel %vm1318, %v1472, %v1473
        %v1475 = vrot.slane %v809, 6
        %v1476 = vrot.slane %v1475, 4
        %v1477 = vrot.slane %v927, 6
        %v1478 = vsel %vm1318, %v1476, %v1477
        %v1479 = vrot.slane %v1477, 4
        %v1480 = vrot.slane %v814, 6
        %v1481 = vsel %vm1318, %v1479, %v1480
        %v1482 = vrot.slane %v1480, 4
        %v1483 = vrot.slane %v928, 6
        %v1484 = vsel %vm1318, %v1482, %v1483
        %v1485 = vrot.slane %v1483, 4
        %v1486 = vrot.slane %v819, 6
        %v1487 = vsel %vm1318, %v1485, %v1486
        %v1488 = vrot.slane %v929, 6
        %v1489 = vrot.slane %v1488, 4
        %v1490 = vrot.slane %v824, 6
        %v1491 = vsel %vm1318, %v1489, %v1490
        %v1492 = vrot.slane %v1490, 4
        %v1493 = vrot.slane %v930, 6
        %v1494 = vsel %vm1318, %v1492, %v1493
        %v1495 = vrot.slane %v1493, 4
        %v1496 = vrot.slane %v829, 6
        %v1497 = vsel %vm1318, %v1495, %v1496
        %v1498 = vrot.slane %v1496, 4
        %v1499 = vrot.slane %v931, 6
        %v1500 = vsel %vm1318, %v1498, %v1499
        %v1501 = vrot.slane %v834, 6
        %v1502 = vrot.slane %v1501, 4
        %v1503 = vrot.slane %v932, 6
        %v1504 = vsel %vm1318, %v1502, %v1503
        %v1505 = vrot.slane %v1503, 4
        %v1506 = vrot.slane %v839, 6
        %v1507 = vsel %vm1318, %v1505, %v1506
        %v1508 = vrot.slane %v1506, 4
        %v1509 = vrot.slane %v933, 6
        %v1510 = vsel %vm1318, %v1508, %v1509
        %v1511 = vrot.slane %v1509, 4
        %v1512 = vrot.slane %v844, 6
        %v1513 = vsel %vm1318, %v1511, %v1512
        %v1514 = vrot.slane %v934, 6
        %v1515 = vrot.slane %v1514, 4
        %v1516 = vrot.slane %v849, 6
        %v1517 = vsel %vm1318, %v1515, %v1516
        %v1518 = vrot.slane %v1516, 4
        %v1519 = vrot.slane %v935, 6
        %v1520 = vsel %vm1318, %v1518, %v1519
        %v1521 = vrot.slane %v1519, 4
        %v1522 = vrot.slane %v854, 6
        %v1523 = vsel %vm1318, %v1521, %v1522
        %v1524 = vrot.slane %v1522, 4
        %v1525 = vrot.slane %v936, 6
        %v1526 = vsel %vm1318, %v1524, %v1525
        %v1591 = vadd.f32 %v1252, %v1322
        %v1592 = vadd.f32 %v1253, %v1325
        %v1593 = vadd.f32 %v1254, %v1328
        %v1594 = vadd.f32 %v1255, %v1331
        %v1595 = vadd.f32 %v1256, %v1335
        %v1596 = vadd.f32 %v1257, %v1338
        %v1597 = vadd.f32 %v1258, %v1341
        %v1598 = vadd.f32 %v1259, %v1344
        %v1599 = vadd.f32 %v1260, %v1348
        %v1600 = vadd.f32 %v1261, %v1351
        %v1601 = vadd.f32 %v1262, %v1354
        %v1602 = vadd.f32 %v1263, %v1357
        %v1603 = vadd.f32 %v1264, %v1361
        %v1604 = vadd.f32 %v1265, %v1364
        %v1605 = vadd.f32 %v1266, %v1367
        %v1606 = vadd.f32 %v1267, %v1370
        %v1607 = vadd.f32 %v1268, %v1374
        %v1608 = vadd.f32 %v1269, %v1377
        %v1609 = vadd.f32 %v1270, %v1380
        %v1610 = vadd.f32 %v1271, %v1383
        %v1611 = vadd.f32 %v1272, %v1387
        %v1612 = vadd.f32 %v1273, %v1390
        %v1613 = vadd.f32 %v1274, %v1393
        %v1614 = vadd.f32 %v1275, %v1396
        %v1615 = vadd.f32 %v1276, %v1400
        %v1616 = vadd.f32 %v1277, %v1403
        %v1617 = vadd.f32 %v1278, %v1406
        %v1618 = vadd.f32 %v1279, %v1409
        %v1619 = vadd.f32 %v1280, %v1413
        %v1620 = vadd.f32 %v1281, %v1416
        %v1621 = vadd.f32 %v1282, %v1419
        %v1622 = vadd.f32 %v1283, %v1422
        %v1623 = vadd.f32 %v1284, %v1426
        %v1624 = vadd.f32 %v1285, %v1429
        %v1625 = vadd.f32 %v1286, %v1432
        %v1626 = vadd.f32 %v1287, %v1435
        %v1627 = vadd.f32 %v1288, %v1439
        %v1628 = vadd.f32 %v1289, %v1442
        %v1629 = vadd.f32 %v1290, %v1445
        %v1630 = vadd.f32 %v1291, %v1448
        %v1631 = vadd.f32 %v1292, %v1452
        %v1632 = vadd.f32 %v1293, %v1455
        %v1633 = vadd.f32 %v1294, %v1458
        %v1634 = vadd.f32 %v1295, %v1461
        %v1635 = vadd.f32 %v1296, %v1465
        %v1636 = vadd.f32 %v1297, %v1468
        %v1637 = vadd.f32 %v1298, %v1471
        %v1638 = vadd.f32 %v1299, %v1474
        %v1639 = vadd.f32 %v1300, %v1478
        %v1640 = vadd.f32 %v1301, %v1481
        %v1641 = vadd.f32 %v1302, %v1484
        %v1642 = vadd.f32 %v1303, %v1487
        %v1643 = vadd.f32 %v1304, %v1491
        %v1644 = vadd.f32 %v1305, %v1494
        %v1645 = vadd.f32 %v1306, %v1497
        %v1646 = vadd.f32 %v1307, %v1500
        %v1647 = vadd.f32 %v1308, %v1504
        %v1648 = vadd.f32 %v1309, %v1507
        %v1649 = vadd.f32 %v1310, %v1510
        %v1650 = vadd.f32 %v1311, %v1513
        %v1651 = vadd.f32 %v1312, %v1517
        %v1652 = vadd.f32 %v1313, %v1520
        %v1653 = vadd.f32 %v1314, %v1523
        %v1654 = vadd.f32 %v1315, %v1526
        %vm1655 = vcmask 1040384
        %vm1656 = vcmask 1044484
        %vm1657 = vmor %vm1655, %vm1656
        %v1658 = vrot.slane %v659, 7
        %v1659 = vrot.slane %v1658, 4
        %v1660 = vrot.slane %v897, 7
        %v1661 = vsel %vm1657, %v1659, %v1660
        %v1662 = vrot.slane %v1660, 4
        %v1663 = vrot.slane %v664, 7
        %v1664 = vsel %vm1657, %v1662, %v1663
        %v1665 = vrot.slane %v1663, 4
        %v1666 = vrot.slane %v898, 7
        %v1667 = vsel %vm1657, %v1665, %v1666
        %v1668 = vrot.slane %v1666, 4
        %v1669 = vrot.slane %v669, 7
        %v1670 = vsel %vm1657, %v1668, %v1669
        %v1671 = vrot.slane %v899, 7
        %v1672 = vrot.slane %v1671, 4
        %v1673 = vrot.slane %v674, 7
        %v1674 = vsel %vm1657, %v1672, %v1673
        %v1675 = vrot.slane %v1673, 4
        %v1676 = vrot.slane %v900, 7
        %v1677 = vsel %vm1657, %v1675, %v1676
        %v1678 = vrot.slane %v1676, 4
        %v1679 = vrot.slane %v679, 7
        %v1680 = vsel %vm1657, %v1678, %v1679
        %v1681 = vrot.slane %v1679, 4
        %v1682 = vrot.slane %v901, 7
        %v1683 = vsel %vm1657, %v1681, %v1682
        %v1684 = vrot.slane %v684, 7
        %v1685 = vrot.slane %v1684, 4
        %v1686 = vrot.slane %v902, 7
        %v1687 = vsel %vm1657, %v1685, %v1686
        %v1688 = vrot.slane %v1686, 4
        %v1689 = vrot.slane %v689, 7
        %v1690 = vsel %vm1657, %v1688, %v1689
        %v1691 = vrot.slane %v1689, 4
        %v1692 = vrot.slane %v903, 7
        %v1693 = vsel %vm1657, %v1691, %v1692
        %v1694 = vrot.slane %v1692, 4
        %v1695 = vrot.slane %v694, 7
        %v1696 = vsel %vm1657, %v1694, %v1695
        %v1697 = vrot.slane %v904, 7
        %v1698 = vrot.slane %v1697, 4
        %v1699 = vrot.slane %v699, 7
        %v1700 = vsel %vm1657, %v1698, %v1699
        %v1701 = vrot.slane %v1699, 4
        %v1702 = vrot.slane %v905, 7
        %v1703 = vsel %vm1657, %v1701, %v1702
        %v1704 = vrot.slane %v1702, 4
        %v1705 = vrot.slane %v704, 7
        %v1706 = vsel %vm1657, %v1704, %v1705
        %v1707 = vrot.slane %v1705, 4
        %v1708 = vrot.slane %v906, 7
        %v1709 = vsel %vm1657, %v1707, %v1708
        %v1710 = vrot.slane %v709, 7
        %v1711 = vrot.slane %v1710, 4
        %v1712 = vrot.slane %v907, 7
        %v1713 = vsel %vm1657, %v1711, %v1712
        %v1714 = vrot.slane %v1712, 4
        %v1715 = vrot.slane %v714, 7
        %v1716 = vsel %vm1657, %v1714, %v1715
        %v1717 = vrot.slane %v1715, 4
        %v1718 = vrot.slane %v908, 7
        %v1719 = vsel %vm1657, %v1717, %v1718
        %v1720 = vrot.slane %v1718, 4
        %v1721 = vrot.slane %v719, 7
        %v1722 = vsel %vm1657, %v1720, %v1721
        %v1723 = vrot.slane %v909, 7
        %v1724 = vrot.slane %v1723, 4
        %v1725 = vrot.slane %v724, 7
        %v1726 = vsel %vm1657, %v1724, %v1725
        %v1727 = vrot.slane %v1725, 4
        %v1728 = vrot.slane %v910, 7
        %v1729 = vsel %vm1657, %v1727, %v1728
        %v1730 = vrot.slane %v1728, 4
        %v1731 = vrot.slane %v729, 7
        %v1732 = vsel %vm1657, %v1730, %v1731
        %v1733 = vrot.slane %v1731, 4
        %v1734 = vrot.slane %v911, 7
        %v1735 = vsel %vm1657, %v1733, %v1734
        %v1736 = vrot.slane %v734, 7
        %v1737 = vrot.slane %v1736, 4
        %v1738 = vrot.slane %v912, 7
        %v1739 = vsel %vm1657, %v1737, %v1738
        %v1740 = vrot.slane %v1738, 4
        %v1741 = vrot.slane %v739, 7
        %v1742 = vsel %vm1657, %v1740, %v1741
        %v1743 = vrot.slane %v1741, 4
        %v1744 = vrot.slane %v913, 7
        %v1745 = vsel %vm1657, %v1743, %v1744
        %v1746 = vrot.slane %v1744, 4
        %v1747 = vrot.slane %v744, 7
        %v1748 = vsel %vm1657, %v1746, %v1747
        %v1749 = vrot.slane %v914, 7
        %v1750 = vrot.slane %v1749, 4
        %v1751 = vrot.slane %v749, 7
        %v1752 = vsel %vm1657, %v1750, %v1751
        %v1753 = vrot.slane %v1751, 4
        %v1754 = vrot.slane %v915, 7
        %v1755 = vsel %vm1657, %v1753, %v1754
        %v1756 = vrot.slane %v1754, 4
        %v1757 = vrot.slane %v754, 7
        %v1758 = vsel %vm1657, %v1756, %v1757
        %v1759 = vrot.slane %v1757, 4
        %v1760 = vrot.slane %v916, 7
        %v1761 = vsel %vm1657, %v1759, %v1760
        %v1762 = vrot.slane %v759, 7
        %v1763 = vrot.slane %v1762, 4
        %v1764 = vrot.slane %v917, 7
        %v1765 = vsel %vm1657, %v1763, %v1764
        %v1766 = vrot.slane %v1764, 4
        %v1767 = vrot.slane %v764, 7
        %v1768 = vsel %vm1657, %v1766, %v1767
        %v1769 = vrot.slane %v1767, 4
        %v1770 = vrot.slane %v918, 7
        %v1771 = vsel %vm1657, %v1769, %v1770
        %v1772 = vrot.slane %v1770, 4
        %v1773 = vrot.slane %v769, 7
        %v1774 = vsel %vm1657, %v1772, %v1773
        %v1775 = vrot.slane %v919, 7
        %v1776 = vrot.slane %v1775, 4
        %v1777 = vrot.slane %v774, 7
        %v1778 = vsel %vm1657, %v1776, %v1777
        %v1779 = vrot.slane %v1777, 4
        %v1780 = vrot.slane %v920, 7
        %v1781 = vsel %vm1657, %v1779, %v1780
        %v1782 = vrot.slane %v1780, 4
        %v1783 = vrot.slane %v779, 7
        %v1784 = vsel %vm1657, %v1782, %v1783
        %v1785 = vrot.slane %v1783, 4
        %v1786 = vrot.slane %v921, 7
        %v1787 = vsel %vm1657, %v1785, %v1786
        %v1788 = vrot.slane %v784, 7
        %v1789 = vrot.slane %v1788, 4
        %v1790 = vrot.slane %v922, 7
        %v1791 = vsel %vm1657, %v1789, %v1790
        %v1792 = vrot.slane %v1790, 4
        %v1793 = vrot.slane %v789, 7
        %v1794 = vsel %vm1657, %v1792, %v1793
        %v1795 = vrot.slane %v1793, 4
        %v1796 = vrot.slane %v923, 7
        %v1797 = vsel %vm1657, %v1795, %v1796
        %v1798 = vrot.slane %v1796, 4
        %v1799 = vrot.slane %v794, 7
        %v1800 = vsel %vm1657, %v1798, %v1799
        %v1801 = vrot.slane %v924, 7
        %v1802 = vrot.slane %v1801, 4
        %v1803 = vrot.slane %v799, 7
        %v1804 = vsel %vm1657, %v1802, %v1803
        %v1805 = vrot.slane %v1803, 4
        %v1806 = vrot.slane %v925, 7
        %v1807 = vsel %vm1657, %v1805, %v1806
        %v1808 = vrot.slane %v1806, 4
        %v1809 = vrot.slane %v804, 7
        %v1810 = vsel %vm1657, %v1808, %v1809
        %v1811 = vrot.slane %v1809, 4
        %v1812 = vrot.slane %v926, 7
        %v1813 = vsel %vm1657, %v1811, %v1812
        %v1814 = vrot.slane %v809, 7
        %v1815 = vrot.slane %v1814, 4
        %v1816 = vrot.slane %v927, 7
        %v1817 = vsel %vm1657, %v1815, %v1816
        %v1818 = vrot.slane %v1816, 4
        %v1819 = vrot.slane %v814, 7
        %v1820 = vsel %vm1657, %v1818, %v1819
        %v1821 = vrot.slane %v1819, 4
        %v1822 = vrot.slane %v928, 7
        %v1823 = vsel %vm1657, %v1821, %v1822
        %v1824 = vrot.slane %v1822, 4
        %v1825 = vrot.slane %v819, 7
        %v1826 = vsel %vm1657, %v1824, %v1825
        %v1827 = vrot.slane %v929, 7
        %v1828 = vrot.slane %v1827, 4
        %v1829 = vrot.slane %v824, 7
        %v1830 = vsel %vm1657, %v1828, %v1829
        %v1831 = vrot.slane %v1829, 4
        %v1832 = vrot.slane %v930, 7
        %v1833 = vsel %vm1657, %v1831, %v1832
        %v1834 = vrot.slane %v1832, 4
        %v1835 = vrot.slane %v829, 7
        %v1836 = vsel %vm1657, %v1834, %v1835
        %v1837 = vrot.slane %v1835, 4
        %v1838 = vrot.slane %v931, 7
        %v1839 = vsel %vm1657, %v1837, %v1838
        %v1840 = vrot.slane %v834, 7
        %v1841 = vrot.slane %v1840, 4
        %v1842 = vrot.slane %v932, 7
        %v1843 = vsel %vm1657, %v1841, %v1842
        %v1844 = vrot.slane %v1842, 4
        %v1845 = vrot.slane %v839, 7
        %v1846 = vsel %vm1657, %v1844, %v1845
        %v1847 = vrot.slane %v1845, 4
        %v1848 = vrot.slane %v933, 7
        %v1849 = vsel %vm1657, %v1847, %v1848
        %v1850 = vrot.slane %v1848, 4
        %v1851 = vrot.slane %v844, 7
        %v1852 = vsel %vm1657, %v1850, %v1851
        %v1853 = vrot.slane %v934, 7
        %v1854 = vrot.slane %v1853, 4
        %v1855 = vrot.slane %v849, 7
        %v1856 = vsel %vm1657, %v1854, %v1855
        %v1857 = vrot.slane %v1855, 4
        %v1858 = vrot.slane %v935, 7
        %v1859 = vsel %vm1657, %v1857, %v1858
        %v1860 = vrot.slane %v1858, 4
        %v1861 = vrot.slane %v854, 7
        %v1862 = vsel %vm1657, %v1860, %v1861
        %v1863 = vrot.slane %v1861, 4
        %v1864 = vrot.slane %v936, 7
        %v1865 = vsel %vm1657, %v1863, %v1864
        %v1930 = vadd.f32 %v1591, %v1661
        %v1931 = vadd.f32 %v1592, %v1664
        %v1932 = vadd.f32 %v1593, %v1667
        %v1933 = vadd.f32 %v1594, %v1670
        %v1934 = vadd.f32 %v1595, %v1674
        %v1935 = vadd.f32 %v1596, %v1677
        %v1936 = vadd.f32 %v1597, %v1680
        %v1937 = vadd.f32 %v1598, %v1683
        %v1938 = vadd.f32 %v1599, %v1687
        %v1939 = vadd.f32 %v1600, %v1690
        %v1940 = vadd.f32 %v1601, %v1693
        %v1941 = vadd.f32 %v1602, %v1696
        %v1942 = vadd.f32 %v1603, %v1700
        %v1943 = vadd.f32 %v1604, %v1703
        %v1944 = vadd.f32 %v1605, %v1706
        %v1945 = vadd.f32 %v1606, %v1709
        %v1946 = vadd.f32 %v1607, %v1713
        %v1947 = vadd.f32 %v1608, %v1716
        %v1948 = vadd.f32 %v1609, %v1719
        %v1949 = vadd.f32 %v1610, %v1722
        %v1950 = vadd.f32 %v1611, %v1726
        %v1951 = vadd.f32 %v1612, %v1729
        %v1952 = vadd.f32 %v1613, %v1732
        %v1953 = vadd.f32 %v1614, %v1735
        %v1954 = vadd.f32 %v1615, %v1739
        %v1955 = vadd.f32 %v1616, %v1742
        %v1956 = vadd.f32 %v1617, %v1745
        %v1957 = vadd.f32 %v1618, %v1748
        %v1958 = vadd.f32 %v1619, %v1752
        %v1959 = vadd.f32 %v1620, %v1755
        %v1960 = vadd.f32 %v1621, %v1758
        %v1961 = vadd.f32 %v1622, %v1761
        %v1962 = vadd.f32 %v1623, %v1765
        %v1963 = vadd.f32 %v1624, %v1768
        %v1964 = vadd.f32 %v1625, %v1771
        %v1965 = vadd.f32 %v1626, %v1774
        %v1966 = vadd.f32 %v1627, %v1778
        %v1967 = vadd.f32 %v1628, %v1781
        %v1968 = vadd.f32 %v1629, %v1784
        %v1969 = vadd.f32 %v1630, %v1787
        %v1970 = vadd.f32 %v1631, %v1791
        %v1971 = vadd.f32 %v1632, %v1794
        %v1972 = vadd.f32 %v1633, %v1797
        %v1973 = vadd.f32 %v1634, %v1800
        %v1974 = vadd.f32 %v1635, %v1804
        %v1975 = vadd.f32 %v1636, %v1807
        %v1976 = vadd.f32 %v1637, %v1810
        %v1977 = vadd.f32 %v1638, %v1813
        %v1978 = vadd.f32 %v1639, %v1817
        %v1979 = vadd.f32 %v1640, %v1820
        %v1980 = vadd.f32 %v1641, %v1823
        %v1981 = vadd.f32 %v1642, %v1826
        %v1982 = vadd.f32 %v1643, %v1830
        %v1983 = vadd.f32 %v1644, %v1833
        %v1984 = vadd.f32 %v1645, %v1836
        %v1985 = vadd.f32 %v1646, %v1839
        %v1986 = vadd.f32 %v1647, %v1843
        %v1987 = vadd.f32 %v1648, %v1846
        %v1988 = vadd.f32 %v1649, %v1849
        %v1989 = vadd.f32 %v1650, %v1852
        %v1990 = vadd.f32 %v1651, %v1856
        %v1991 = vadd.f32 %v1652, %v1859
        %v1992 = vadd.f32 %v1653, %v1862
        %v1993 = vadd.f32 %v1654, %v1865
        %v1994 = vadd.f32 %v1930, %v897
        %v1995 = vadd.f32 %v1931, %v664
        %v1996 = vadd.f32 %v1932, %v898
        %v1997 = vadd.f32 %v1933, %v669
        %v1998 = vadd.f32 %v1934, %v674
        %v1999 = vadd.f32 %v1935, %v900
        %v2000 = vadd.f32 %v1936, %v679
        %v2001 = vadd.f32 %v1937, %v901
        %v2002 = vadd.f32 %v1938, %v902
        %v2003 = vadd.f32 %v1939, %v689
        %v2004 = vadd.f32 %v1940, %v903
        %v2005 = vadd.f32 %v1941, %v694
        %v2006 = vadd.f32 %v1942, %v699
        %v2007 = vadd.f32 %v1943, %v905
        %v2008 = vadd.f32 %v1944, %v704
        %v2009 = vadd.f32 %v1945, %v906
        %v2010 = vadd.f32 %v1946, %v907
        %v2011 = vadd.f32 %v1947, %v714
        %v2012 = vadd.f32 %v1948, %v908
        %v2013 = vadd.f32 %v1949, %v719
        %v2014 = vadd.f32 %v1950, %v724
        %v2015 = vadd.f32 %v1951, %v910
        %v2016 = vadd.f32 %v1952, %v729
        %v2017 = vadd.f32 %v1953, %v911
        %v2018 = vadd.f32 %v1954, %v912
        %v2019 = vadd.f32 %v1955, %v739
        %v2020 = vadd.f32 %v1956, %v913
        %v2021 = vadd.f32 %v1957, %v744
        %v2022 = vadd.f32 %v1958, %v749
        %v2023 = vadd.f32 %v1959, %v915
        %v2024 = vadd.f32 %v1960, %v754
        %v2025 = vadd.f32 %v1961, %v916
        %v2026 = vadd.f32 %v1962, %v917
        %v2027 = vadd.f32 %v1963, %v764
        %v2028 = vadd.f32 %v1964, %v918
        %v2029 = vadd.f32 %v1965, %v769
        %v2030 = vadd.f32 %v1966, %v774
        %v2031 = vadd.f32 %v1967, %v920
        %v2032 = vadd.f32 %v1968, %v779
        %v2033 = vadd.f32 %v1969, %v921
        %v2034 = vadd.f32 %v1970, %v922
        %v2035 = vadd.f32 %v1971, %v789
        %v2036 = vadd.f32 %v1972, %v923
        %v2037 = vadd.f32 %v1973, %v794
        %v2038 = vadd.f32 %v1974, %v799
        %v2039 = vadd.f32 %v1975, %v925
        %v2040 = vadd.f32 %v1976, %v804
        %v2041 = vadd.f32 %v1977, %v926
        %v2042 = vadd.f32 %v1978, %v927
        %v2043 = vadd.f32 %v1979, %v814
        %v2044 = vadd.f32 %v1980, %v928
        %v2045 = vadd.f32 %v1981, %v819
        %v2046 = vadd.f32 %v1982, %v824
        %v2047 = vadd.f32 %v1983, %v930
        %v2048 = vadd.f32 %v1984, %v829
        %v2049 = vadd.f32 %v1985, %v931
        %v2050 = vadd.f32 %v1986, %v932
        %v2051 = vadd.f32 %v1987, %v839
        %v2052 = vadd.f32 %v1988, %v933
        %v2053 = vadd.f32 %v1989, %v844
        %v2054 = vadd.f32 %v1990, %v849
        %v2055 = vadd.f32 %v1991, %v935
        %v2056 = vadd.f32 %v1992, %v854
        %v2057 = vadd.f32 %v1993, %v936
        %v2060 = vcombine.high %v335, %v335
        %v2061 = vcombine.high %v336, %v336
        %v2064 = vmul.f32 %v1994, %v335
        %v2065 = vmul.f32 %v1995, %v2060
        %v2066 = vmul.f32 %v1996, %v336
        %v2067 = vmul.f32 %v1997, %v2061
        %v2068 = vmul.f32 %v1998, %v335
        %v2069 = vmul.f32 %v1999, %v2060
        %v2070 = vmul.f32 %v2000, %v336
        %v2071 = vmul.f32 %v2001, %v2061
        %v2072 = vmul.f32 %v2002, %v335
        %v2073 = vmul.f32 %v2003, %v2060
        %v2074 = vmul.f32 %v2004, %v336
        %v2075 = vmul.f32 %v2005, %v2061
        %v2076 = vmul.f32 %v2006, %v335
        %v2077 = vmul.f32 %v2007, %v2060
        %v2078 = vmul.f32 %v2008, %v336
        %v2079 = vmul.f32 %v2009, %v2061
        %v2080 = vmul.f32 %v2010, %v335
        %v2081 = vmul.f32 %v2011, %v2060
        %v2082 = vmul.f32 %v2012, %v336
        %v2083 = vmul.f32 %v2013, %v2061
        %v2084 = vmul.f32 %v2014, %v335
        %v2085 = vmul.f32 %v2015, %v2060
        %v2086 = vmul.f32 %v2016, %v336
        %v2087 = vmul.f32 %v2017, %v2061
        %v2088 = vmul.f32 %v2018, %v335
        %v2089 = vmul.f32 %v2019, %v2060
        %v2090 = vmul.f32 %v2020, %v336
        %v2091 = vmul.f32 %v2021, %v2061
        %v2092 = vmul.f32 %v2022, %v335
        %v2093 = vmul.f32 %v2023, %v2060
        %v2094 = vmul.f32 %v2024, %v336
        %v2095 = vmul.f32 %v2025, %v2061
        %v2096 = vmul.f32 %v2026, %v335
        %v2097 = vmul.f32 %v2027, %v2060
        %v2098 = vmul.f32 %v2028, %v336
        %v2099 = vmul.f32 %v2029, %v2061
        %v2100 = vmul.f32 %v2030, %v335
        %v2101 = vmul.f32 %v2031, %v2060
        %v2102 = vmul.f32 %v2032, %v336
        %v2103 = vmul.f32 %v2033, %v2061
        %v2104 = vmul.f32 %v2034, %v335
        %v2105 = vmul.f32 %v2035, %v2060
        %v2106 = vmul.f32 %v2036, %v336
        %v2107 = vmul.f32 %v2037, %v2061
        %v2108 = vmul.f32 %v2038, %v335
        %v2109 = vmul.f32 %v2039, %v2060
        %v2110 = vmul.f32 %v2040, %v336
        %v2111 = vmul.f32 %v2041, %v2061
        %v2112 = vmul.f32 %v2042, %v335
        %v2113 = vmul.f32 %v2043, %v2060
        %v2114 = vmul.f32 %v2044, %v336
        %v2115 = vmul.f32 %v2045, %v2061
        %v2116 = vmul.f32 %v2046, %v335
        %v2117 = vmul.f32 %v2047, %v2060
        %v2118 = vmul.f32 %v2048, %v336
        %v2119 = vmul.f32 %v2049, %v2061
        %v2120 = vmul.f32 %v2050, %v335
        %v2121 = vmul.f32 %v2051, %v2060
        %v2122 = vmul.f32 %v2052, %v336
        %v2123 = vmul.f32 %v2053, %v2061
        %v2124 = vmul.f32 %v2054, %v335
        %v2125 = vmul.f32 %v2055, %v2060
        %v2126 = vmul.f32 %v2056, %v336
        %v2127 = vmul.f32 %v2057, %v2061
        %v2128 = vmul.f32 %v2064, %v2080
        %v2129 = vmul.f32 %v2065, %v2081
        %v2130 = vmul.f32 %v2066, %v2082
        %v2131 = vmul.f32 %v2067, %v2083
        %v2132 = vmul.f32 %v2068, %v2084
        %v2133 = vmul.f32 %v2069, %v2085
        %v2134 = vmul.f32 %v2070, %v2086
        %v2135 = vmul.f32 %v2071, %v2087
        %v2136 = vmul.f32 %v2072, %v2088
        %v2137 = vmul.f32 %v2073, %v2089
        %v2138 = vmul.f32 %v2074, %v2090
        %v2139 = vmul.f32 %v2075, %v2091
        %v2140 = vmul.f32 %v2076, %v2092
        %v2141 = vmul.f32 %v2077, %v2093
        %v2142 = vmul.f32 %v2078, %v2094
        %v2143 = vmul.f32 %v2079, %v2095
        %v2144 = vsub.f32 %v2096, %v2128
        %v2145 = vsub.f32 %v2097, %v2129
        %v2146 = vsub.f32 %v2098, %v2130
        %v2147 = vsub.f32 %v2099, %v2131
        %v2148 = vsub.f32 %v2100, %v2132
        %v2149 = vsub.f32 %v2101, %v2133
        %v2150 = vsub.f32 %v2102, %v2134
        %v2151 = vsub.f32 %v2103, %v2135
        %v2152 = vsub.f32 %v2104, %v2136
        %v2153 = vsub.f32 %v2105, %v2137
        %v2154 = vsub.f32 %v2106, %v2138
        %v2155 = vsub.f32 %v2107, %v2139
        %v2156 = vsub.f32 %v2108, %v2140
        %v2157 = vsub.f32 %v2109, %v2141
        %v2158 = vsub.f32 %v2110, %v2142
        %v2159 = vsub.f32 %v2111, %v2143
        %v2160 = vmul.f32 %v2064, %v2064
        %v2161 = vmul.f32 %v2065, %v2065
        %v2162 = vmul.f32 %v2066, %v2066
        %v2163 = vmul.f32 %v2067, %v2067
        %v2164 = vmul.f32 %v2068, %v2068
        %v2165 = vmul.f32 %v2069, %v2069
        %v2166 = vmul.f32 %v2070, %v2070
        %v2167 = vmul.f32 %v2071, %v2071
        %v2168 = vmul.f32 %v2072, %v2072
        %v2169 = vmul.f32 %v2073, %v2073
        %v2170 = vmul.f32 %v2074, %v2074
        %v2171 = vmul.f32 %v2075, %v2075
        %v2172 = vmul.f32 %v2076, %v2076
        %v2173 = vmul.f32 %v2077, %v2077
        %v2174 = vmul.f32 %v2078, %v2078
        %v2175 = vmul.f32 %v2079, %v2079
        %v2176 = vsub.f32 %v2112, %v2160
        %v2177 = vsub.f32 %v2113, %v2161
        %v2178 = vsub.f32 %v2114, %v2162
        %v2179 = vsub.f32 %v2115, %v2163
        %v2180 = vsub.f32 %v2116, %v2164
        %v2181 = vsub.f32 %v2117, %v2165
        %v2182 = vsub.f32 %v2118, %v2166
        %v2183 = vsub.f32 %v2119, %v2167
        %v2184 = vsub.f32 %v2120, %v2168
        %v2185 = vsub.f32 %v2121, %v2169
        %v2186 = vsub.f32 %v2122, %v2170
        %v2187 = vsub.f32 %v2123, %v2171
        %v2188 = vsub.f32 %v2124, %v2172
        %v2189 = vsub.f32 %v2125, %v2173
        %v2190 = vsub.f32 %v2126, %v2174
        %v2191 = vsub.f32 %v2127, %v2175
        %v2192 = vadd.f32 %v2176, 1e-05
        %v2193 = vadd.f32 %v2177, 1e-05
        %v2194 = vadd.f32 %v2178, 1e-05
        %v2195 = vadd.f32 %v2179, 1e-05
        %v2196 = vadd.f32 %v2180, 1e-05
        %v2197 = vadd.f32 %v2181, 1e-05
        %v2198 = vadd.f32 %v2182, 1e-05
        %v2199 = vadd.f32 %v2183, 1e-05
        %v2200 = vadd.f32 %v2184, 1e-05
        %v2201 = vadd.f32 %v2185, 1e-05
        %v2202 = vadd.f32 %v2186, 1e-05
        %v2203 = vadd.f32 %v2187, 1e-05
        %v2204 = vadd.f32 %v2188, 1e-05
        %v2205 = vadd.f32 %v2189, 1e-05
        %v2206 = vadd.f32 %v2190, 1e-05
        %v2207 = vadd.f32 %v2191, 1e-05
        %v2208 = vrcp.pop %v2192
        %v2209 = vmul.f32 %v2144, %v2208
        %v2210 = vrcp.pop %v2193
        %v2211 = vmul.f32 %v2145, %v2210
        %v2212 = vrcp.pop %v2194
        %v2213 = vmul.f32 %v2146, %v2212
        %v2214 = vrcp.pop %v2195
        %v2215 = vmul.f32 %v2147, %v2214
        %v2216 = vrcp.pop %v2196
        %v2217 = vmul.f32 %v2148, %v2216
        %v2218 = vrcp.pop %v2197
        %v2219 = vmul.f32 %v2149, %v2218
        %v2220 = vrcp.pop %v2198
        %v2221 = vmul.f32 %v2150, %v2220
        %v2222 = vrcp.pop %v2199
        %v2223 = vmul.f32 %v2151, %v2222
        %v2224 = vrcp.pop %v2200
        %v2225 = vmul.f32 %v2152, %v2224
        %v2226 = vrcp.pop %v2201
        %v2227 = vmul.f32 %v2153, %v2226
        %v2228 = vrcp.pop %v2202
        %v2229 = vmul.f32 %v2154, %v2228
        %v2230 = vrcp.pop %v2203
        %v2231 = vmul.f32 %v2155, %v2230
        %v2232 = vrcp.pop %v2204
        %v2233 = vmul.f32 %v2156, %v2232
        %v2234 = vrcp.pop %v2205
        %v2235 = vmul.f32 %v2157, %v2234
        %v2236 = vrcp.pop %v2206
        %v2237 = vmul.f32 %v2158, %v2236
        %v2238 = vrcp.pop %v2207
        %v2239 = vmul.f32 %v2159, %v2238
        %v2240 = vmul.f32 %v2209, %v2064
        %v2241 = vmul.f32 %v2211, %v2065
        %v2242 = vmul.f32 %v2213, %v2066
        %v2243 = vmul.f32 %v2215, %v2067
        %v2244 = vmul.f32 %v2217, %v2068
        %v2245 = vmul.f32 %v2219, %v2069
        %v2246 = vmul.f32 %v2221, %v2070
        %v2247 = vmul.f32 %v2223, %v2071
        %v2248 = vmul.f32 %v2225, %v2072
        %v2249 = vmul.f32 %v2227, %v2073
        %v2250 = vmul.f32 %v2229, %v2074
        %v2251 = vmul.f32 %v2231, %v2075
        %v2252 = vmul.f32 %v2233, %v2076
        %v2253 = vmul.f32 %v2235, %v2077
        %v2254 = vmul.f32 %v2237, %v2078
        %v2255 = vmul.f32 %v2239, %v2079
        %v2256 = vsub.f32 %v2080, %v2240
        %v2257 = vsub.f32 %v2081, %v2241
        %v2258 = vsub.f32 %v2082, %v2242
        %v2259 = vsub.f32 %v2083, %v2243
        %v2260 = vsub.f32 %v2084, %v2244
        %v2261 = vsub.f32 %v2085, %v2245
        %v2262 = vsub.f32 %v2086, %v2246
        %v2263 = vsub.f32 %v2087, %v2247
        %v2264 = vsub.f32 %v2088, %v2248
        %v2265 = vsub.f32 %v2089, %v2249
        %v2266 = vsub.f32 %v2090, %v2250
        %v2267 = vsub.f32 %v2091, %v2251
        %v2268 = vsub.f32 %v2092, %v2252
        %v2269 = vsub.f32 %v2093, %v2253
        %v2270 = vsub.f32 %v2094, %v2254
        %v2271 = vsub.f32 %v2095, %v2255
        %v2304 = vcombine.low %v2209, %v2211
        %v2305 = vcombine.low %v2213, %v2215
        %v2306 = vcombine.low %v2217, %v2219
        %v2307 = vcombine.low %v2221, %v2223
        %v2308 = vcombine.low %v2225, %v2227
        %v2309 = vcombine.low %v2229, %v2231
        %v2310 = vcombine.low %v2233, %v2235
        %v2311 = vcombine.low %v2237, %v2239
        %v2312 = vcombine.low %v2256, %v2257
        %v2313 = vcombine.low %v2258, %v2259
        %v2314 = vcombine.low %v2260, %v2261
        %v2315 = vcombine.low %v2262, %v2263
        %v2316 = vcombine.low %v2264, %v2265
        %v2317 = vcombine.low %v2266, %v2267
        %v2318 = vcombine.low %v2268, %v2269
        %v2319 = vcombine.low %v2270, %v2271
        %v2320 = vsel %vm511, %v2304, 0
        %v2322 = vsel %vm511, %v2305, 0
        %v2324 = vsel %vm511, %v2306, 0
        %v2326 = vsel %vm511, %v2307, 0
        %v2328 = vsel %vm511, %v2308, 0
        %v2330 = vsel %vm511, %v2309, 0
        %v2332 = vsel %vm511, %v2310, 0
        %v2334 = vsel %vm511, %v2311, 0
        %v2336 = vsel %vm511, %v2312, 0
        %v2338 = vsel %vm511, %v2313, 0
        %v2340 = vsel %vm511, %v2314, 0
        %v2342 = vsel %vm511, %v2315, 0
        %v2344 = vsel %vm511, %v2316, 0
        %v2346 = vsel %vm511, %v2317, 0
        %v2348 = vsel %vm511, %v2318, 0
        %v2350 = vsel %vm511, %v2319, 0
        %2352 = vmatprep.subr.mxu0 0.0
        %2353 = vmatpush1.msra.mxu0 %v337
        %2354 = vmatprep.subr.mxu0 0.0
        %2355 = vmatpush1.msra.mxu0 %v338
        %2356 = vmatprep.subr.mxu0 0.0
        %2357 = vmatpush1.msra.mxu0 0.0
        %2358 = vmatprep.subr.mxu0 0.0
        %2359 = vmatpush1.msra.mxu0 0.0
        %2360 = vmatprep.subr.mxu0 0.0
        %2361 = vmatpush1.msra.mxu0 0.0
        %2362 = vmatprep.subr.mxu0 0.0
        %2363 = vmatpush1.msra.mxu0 0.0
        %2364 = vmatprep.subr.mxu0 0.0
        %2365 = vmatpush1.msra.mxu0 0.0
        %2366 = vmatprep.subr.mxu0 0.0
        %2367 = vmatpush1.msra.mxu0 0.0
        %2368 = vmatprep.subr.mxu0 0.0
        %2369 = vmatpush1.msra.mxu0 0.0
        %2370 = vmatprep.subr.mxu0 0.0
        %2371 = vmatpush1.msra.mxu0 0.0
        %2372 = vmatprep.subr.mxu0 0.0
        %2373 = vmatpush1.msra.mxu0 0.0
        %2374 = vmatprep.subr.mxu0 0.0
        %2375 = vmatpush1.msra.mxu0 0.0
        %2376 = vmatprep.subr.mxu0 0.0
        %2377 = vmatpush1.msra.mxu0 0.0
        %2378 = vmatprep.subr.mxu0 0.0
        %2379 = vmatpush1.msra.mxu0 0.0
        %2380 = vmatprep.subr.mxu0 0.0
        %2381 = vmatpush1.msra.mxu0 0.0
        %2382 = vmatprep.subr.mxu0 0.0
        %2383 = vmatpush1.msra.mxu0 0.0
        %2384 = vmatprep.subr.mxu0 0.0
        %2385 = vmatpush1.msra.mxu0 0.0
        %2386 = vmatprep.subr.mxu0 0.0
        %2387 = vmatpush1.msra.mxu0 0.0
        %2388 = vmatprep.subr.mxu0 0.0
        %2389 = vmatpush1.msra.mxu0 0.0
        %2390 = vmatprep.subr.mxu0 0.0
        %2391 = vmatpush1.msra.mxu0 0.0
        %2392 = vmatprep.subr.mxu0 0.0
        %2393 = vmatpush1.msra.mxu0 0.0
        %2394 = vmatprep.subr.mxu0 0.0
        %2395 = vmatpush1.msra.mxu0 0.0
        %2396 = vmatprep.subr.mxu0 0.0
        %2397 = vmatpush1.msra.mxu0 0.0
        %2398 = vmatprep.subr.mxu0 0.0
        %2399 = vmatpush1.msra.mxu0 0.0
        %2400 = vmatprep.subr.mxu0 0.0
        %2401 = vmatpush1.msra.mxu0 0.0
        %2402 = vmatprep.subr.mxu0 0.0
        %2403 = vmatpush1.msra.mxu0 0.0
        %2404 = vmatprep.subr.mxu0 0.0
        %2405 = vmatpush1.msra.mxu0 0.0
        %2406 = vmatprep.subr.mxu0 0.0
        %2407 = vmatpush1.msra.mxu0 0.0
        %2408 = vmatprep.subr.mxu0 0.0
        %2409 = vmatpush1.msra.mxu0 0.0
        %2410 = vmatprep.subr.mxu0 0.0
        %2411 = vmatpush1.msra.mxu0 0.0
        %2412 = vmatprep.subr.mxu0 0.0
        %2413 = vmatpush1.msra.mxu0 0.0
        %2414 = vmatprep.subr.mxu0 0.0
        %2415 = vmatpush1.msra.mxu0 0.0
        %2416 = vmatprep.mubr.f32.mxu0 0.0
        %2417 = vmatmul.mubr.f32.gmra.mrb[0].mxu0 %v2320
        %v2418 = vpop.f32.mrb[0].mxu0
        %v2419 = vadd.f32 0.0, %v2418
        %v2420 = vpop.f32.mrb[0].mxu0
        %2421 = vmatprep.mubr.f32.mxu0 0.0
        %2422 = vmatmul.mubr.f32.gmra.mrb[0].mxu0 %v2322
        %v2423 = vpop.f32.mrb[0].mxu0
        %v2424 = vadd.f32 0.0, %v2423
        %v2425 = vpop.f32.mrb[0].mxu0
        %2426 = vmatprep.mubr.f32.mxu0 0.0
        %2427 = vmatmul.mubr.f32.gmra.mrb[0].mxu0 %v2324
        %v2428 = vpop.f32.mrb[0].mxu0
        %v2429 = vadd.f32 0.0, %v2428
        %v2430 = vpop.f32.mrb[0].mxu0
        %2431 = vmatprep.mubr.f32.mxu0 0.0
        %2432 = vmatmul.mubr.f32.gmra.mrb[0].mxu0 %v2326
        %v2433 = vpop.f32.mrb[0].mxu0
        %v2434 = vadd.f32 0.0, %v2433
        %v2435 = vpop.f32.mrb[0].mxu0
        %2436 = vmatprep.mubr.f32.mxu0 0.0
        %2437 = vmatmul.mubr.f32.gmra.mrb[0].mxu0 %v2328
        %v2438 = vpop.f32.mrb[0].mxu0
        %v2439 = vadd.f32 0.0, %v2438
        %v2440 = vpop.f32.mrb[0].mxu0
        %2441 = vmatprep.mubr.f32.mxu0 0.0
        %2442 = vmatmul.mubr.f32.gmra.mrb[0].mxu0 %v2330
        %v2443 = vpop.f32.mrb[0].mxu0
        %v2444 = vadd.f32 0.0, %v2443
        %v2445 = vpop.f32.mrb[0].mxu0
        %2446 = vmatprep.mubr.f32.mxu0 0.0
        %2447 = vmatmul.mubr.f32.gmra.mrb[0].mxu0 %v2332
        %v2448 = vpop.f32.mrb[0].mxu0
        %v2449 = vadd.f32 0.0, %v2448
        %v2450 = vpop.f32.mrb[0].mxu0
        %2451 = vmatprep.mubr.f32.mxu0 0.0
        %2452 = vmatmul.mubr.f32.gmra.mrb[0].mxu0 %v2334
        %v2453 = vpop.f32.mrb[0].mxu0
        %v2454 = vadd.f32 0.0, %v2453
        %v2455 = vpop.f32.mrb[0].mxu0
        %2456 = vmatprep.mubr.f32.mxu0 0.0
        %2457 = vmatmul.mubr.f32.gmra.mrb[0].mxu0 %v2336
        %v2458 = vpop.f32.mrb[0].mxu0
        %v2459 = vadd.f32 0.0, %v2458
        %v2460 = vpop.f32.mrb[0].mxu0
        %2461 = vmatprep.mubr.f32.mxu0 0.0
        %2462 = vmatmul.mubr.f32.gmra.mrb[0].mxu0 %v2338
        %v2463 = vpop.f32.mrb[0].mxu0
        %v2464 = vadd.f32 0.0, %v2463
        %v2465 = vpop.f32.mrb[0].mxu0
        %2466 = vmatprep.mubr.f32.mxu0 0.0
        %2467 = vmatmul.mubr.f32.gmra.mrb[0].mxu0 %v2340
        %v2468 = vpop.f32.mrb[0].mxu0
        %v2469 = vadd.f32 0.0, %v2468
        %v2470 = vpop.f32.mrb[0].mxu0
        %2471 = vmatprep.mubr.f32.mxu0 0.0
        %2472 = vmatmul.mubr.f32.gmra.mrb[0].mxu0 %v2342
        %v2473 = vpop.f32.mrb[0].mxu0
        %v2474 = vadd.f32 0.0, %v2473
        %v2475 = vpop.f32.mrb[0].mxu0
        %2476 = vmatprep.mubr.f32.mxu0 0.0
        %2477 = vmatmul.mubr.f32.gmra.mrb[0].mxu0 %v2344
        %v2478 = vpop.f32.mrb[0].mxu0
        %v2479 = vadd.f32 0.0, %v2478
        %v2480 = vpop.f32.mrb[0].mxu0
        %2481 = vmatprep.mubr.f32.mxu0 0.0
        %2482 = vmatmul.mubr.f32.gmra.mrb[0].mxu0 %v2346
        %v2483 = vpop.f32.mrb[0].mxu0
        %v2484 = vadd.f32 0.0, %v2483
        %v2485 = vpop.f32.mrb[0].mxu0
        %2486 = vmatprep.mubr.f32.mxu0 0.0
        %2487 = vmatmul.mubr.f32.gmra.mrb[0].mxu0 %v2348
        %v2488 = vpop.f32.mrb[0].mxu0
        %v2489 = vadd.f32 0.0, %v2488
        %v2490 = vpop.f32.mrb[0].mxu0
        %2491 = vmatprep.mubr.f32.mxu0 0.0
        %2492 = vmatmul.mubr.f32.gmra.mrb[0].mxu0 %v2350
        %v2493 = vpop.f32.mrb[0].mxu0
        %v2494 = vadd.f32 0.0, %v2493
        %v2495 = vpop.f32.mrb[0].mxu0
        %2496 = vdwg.mxu0
        %v2498 = vsel %vm511, %v339, 0
        %v2501 = vsel %vm511, %v340, 0
        %v2504 = vsel %vm511, %v341, 0
        %v2507 = vsel %vm511, %v342, 0
        %2509 = vmatprep.subr.mxu0 0.0
        %2510 = vmatpush1.msra.mxu0 %v2419
        %2511 = vmatprep.subr.mxu0 0.0
        %2512 = vmatpush1.msra.mxu0 %v2424
        %2513 = vmatprep.subr.mxu0 0.0
        %2514 = vmatpush1.msra.mxu0 0.0
        %2515 = vmatprep.subr.mxu0 0.0
        %2516 = vmatpush1.msra.mxu0 0.0
        %2517 = vmatprep.subr.mxu0 0.0
        %2518 = vmatpush1.msra.mxu0 0.0
        %2519 = vmatprep.subr.mxu0 0.0
        %2520 = vmatpush1.msra.mxu0 0.0
        %2521 = vmatprep.subr.mxu0 0.0
        %2522 = vmatpush1.msra.mxu0 0.0
        %2523 = vmatprep.subr.mxu0 0.0
        %2524 = vmatpush1.msra.mxu0 0.0
        %2525 = vmatprep.subr.mxu0 0.0
        %2526 = vmatpush1.msra.mxu0 0.0
        %2527 = vmatprep.subr.mxu0 0.0
        %2528 = vmatpush1.msra.mxu0 0.0
        %2529 = vmatprep.subr.mxu0 0.0
        %2530 = vmatpush1.msra.mxu0 0.0
        %2531 = vmatprep.subr.mxu0 0.0
        %2532 = vmatpush1.msra.mxu0 0.0
        %2533 = vmatprep.subr.mxu0 0.0
        %2534 = vmatpush1.msra.mxu0 0.0
        %2535 = vmatprep.subr.mxu0 0.0
        %2536 = vmatpush1.msra.mxu0 0.0
        %2537 = vmatprep.subr.mxu0 0.0
        %2538 = vmatpush1.msra.mxu0 0.0
        %2539 = vmatprep.subr.mxu0 0.0
        %2540 = vmatpush1.msra.mxu0 0.0
        %2541 = vmatprep.subr.mxu0 0.0
        %2542 = vmatpush1.msra.mxu0 0.0
        %2543 = vmatprep.subr.mxu0 0.0
        %2544 = vmatpush1.msra.mxu0 0.0
        %2545 = vmatprep.subr.mxu0 0.0
        %2546 = vmatpush1.msra.mxu0 0.0
        %2547 = vmatprep.subr.mxu0 0.0
        %2548 = vmatpush1.msra.mxu0 0.0
        %2549 = vmatprep.subr.mxu0 0.0
        %2550 = vmatpush1.msra.mxu0 0.0
        %2551 = vmatprep.subr.mxu0 0.0
        %2552 = vmatpush1.msra.mxu0 0.0
        %2553 = vmatprep.subr.mxu0 0.0
        %2554 = vmatpush1.msra.mxu0 0.0
        %2555 = vmatprep.subr.mxu0 0.0
        %2556 = vmatpush1.msra.mxu0 0.0
        %2557 = vmatprep.subr.mxu0 0.0
        %2558 = vmatpush1.msra.mxu0 0.0
        %2559 = vmatprep.subr.mxu0 0.0
        %2560 = vmatpush1.msra.mxu0 0.0
        %2561 = vmatprep.subr.mxu0 0.0
        %2562 = vmatpush1.msra.mxu0 0.0
        %2563 = vmatprep.subr.mxu0 0.0
        %2564 = vmatpush1.msra.mxu0 0.0
        %2565 = vmatprep.subr.mxu0 0.0
        %2566 = vmatpush1.msra.mxu0 0.0
        %2567 = vmatprep.subr.mxu0 0.0
        %2568 = vmatpush1.msra.mxu0 0.0
        %2569 = vmatprep.subr.mxu0 0.0
        %2570 = vmatpush1.msra.mxu0 0.0
        %2571 = vmatprep.subr.mxu0 0.0
        %2572 = vmatpush1.msra.mxu0 0.0
        %2573 = vmatprep.mubr.f32.mxu0 0.0
        %2574 = vmatmul.mubr.f32.gmra.mrb[0].mxu0 %v2498
        %v2575 = vpop.f32.mrb[0].mxu0
        %v2576 = vadd.f32 0.0, %v2575
        %v2577 = vpop.f32.mrb[0].mxu0
        %2578 = vmatprep.mubr.f32.mxu0 0.0
        %2579 = vmatmul.mubr.f32.gmra.mrb[0].mxu0 %v2501
        %v2580 = vpop.f32.mrb[0].mxu0
        %v2581 = vadd.f32 0.0, %v2580
        %v2582 = vpop.f32.mrb[0].mxu0
        %2583 = vmatprep.mubr.f32.mxu0 0.0
        %2584 = vmatmul.mubr.f32.gmra.mrb[0].mxu0 %v2504
        %v2585 = vpop.f32.mrb[0].mxu0
        %v2586 = vadd.f32 0.0, %v2585
        %v2587 = vpop.f32.mrb[0].mxu0
        %2588 = vmatprep.mubr.f32.mxu0 0.0
        %2589 = vmatmul.mubr.f32.gmra.mrb[0].mxu0 %v2507
        %v2590 = vpop.f32.mrb[0].mxu0
        %v2591 = vadd.f32 0.0, %v2590
        %v2592 = vpop.f32.mrb[0].mxu0
        %2593 = vdwg.mxu0
        %2594 = vmatprep.subr.mxu0 0.0
        %2595 = vmatpush1.msra.mxu0 %v2429
        %2596 = vmatprep.subr.mxu0 0.0
        %2597 = vmatpush1.msra.mxu0 %v2434
        %2598 = vmatprep.subr.mxu0 0.0
        %2599 = vmatpush1.msra.mxu0 0.0
        %2600 = vmatprep.subr.mxu0 0.0
        %2601 = vmatpush1.msra.mxu0 0.0
        %2602 = vmatprep.subr.mxu0 0.0
        %2603 = vmatpush1.msra.mxu0 0.0
        %2604 = vmatprep.subr.mxu0 0.0
        %2605 = vmatpush1.msra.mxu0 0.0
        %2606 = vmatprep.subr.mxu0 0.0
        %2607 = vmatpush1.msra.mxu0 0.0
        %2608 = vmatprep.subr.mxu0 0.0
        %2609 = vmatpush1.msra.mxu0 0.0
        %2610 = vmatprep.subr.mxu0 0.0
        %2611 = vmatpush1.msra.mxu0 0.0
        %2612 = vmatprep.subr.mxu0 0.0
        %2613 = vmatpush1.msra.mxu0 0.0
        %2614 = vmatprep.subr.mxu0 0.0
        %2615 = vmatpush1.msra.mxu0 0.0
        %2616 = vmatprep.subr.mxu0 0.0
        %2617 = vmatpush1.msra.mxu0 0.0
        %2618 = vmatprep.subr.mxu0 0.0
        %2619 = vmatpush1.msra.mxu0 0.0
        %2620 = vmatprep.subr.mxu0 0.0
        %2621 = vmatpush1.msra.mxu0 0.0
        %2622 = vmatprep.subr.mxu0 0.0
        %2623 = vmatpush1.msra.mxu0 0.0
        %2624 = vmatprep.subr.mxu0 0.0
        %2625 = vmatpush1.msra.mxu0 0.0
        %2626 = vmatprep.subr.mxu0 0.0
        %2627 = vmatpush1.msra.mxu0 0.0
        %2628 = vmatprep.subr.mxu0 0.0
        %2629 = vmatpush1.msra.mxu0 0.0
        %2630 = vmatprep.subr.mxu0 0.0
        %2631 = vmatpush1.msra.mxu0 0.0
        %2632 = vmatprep.subr.mxu0 0.0
        %2633 = vmatpush1.msra.mxu0 0.0
        %2634 = vmatprep.subr.mxu0 0.0
        %2635 = vmatpush1.msra.mxu0 0.0
        %2636 = vmatprep.subr.mxu0 0.0
        %2637 = vmatpush1.msra.mxu0 0.0
        %2638 = vmatprep.subr.mxu0 0.0
        %2639 = vmatpush1.msra.mxu0 0.0
        %2640 = vmatprep.subr.mxu0 0.0
        %2641 = vmatpush1.msra.mxu0 0.0
        %2642 = vmatprep.subr.mxu0 0.0
        %2643 = vmatpush1.msra.mxu0 0.0
        %2644 = vmatprep.subr.mxu0 0.0
        %2645 = vmatpush1.msra.mxu0 0.0
        %2646 = vmatprep.subr.mxu0 0.0
        %2647 = vmatpush1.msra.mxu0 0.0
        %2648 = vmatprep.subr.mxu0 0.0
        %2649 = vmatpush1.msra.mxu0 0.0
        %2650 = vmatprep.subr.mxu0 0.0
        %2651 = vmatpush1.msra.mxu0 0.0
        %2652 = vmatprep.subr.mxu0 0.0
        %2653 = vmatpush1.msra.mxu0 0.0
        %2654 = vmatprep.subr.mxu0 0.0
        %2655 = vmatpush1.msra.mxu0 0.0
        %2656 = vmatprep.subr.mxu0 0.0
        %2657 = vmatpush1.msra.mxu0 0.0
        %2658 = vmatprep.mubr.f32.mxu0 0.0
        %2659 = vmatmul.mubr.f32.gmra.mrb[0].mxu0 %v2498
        %v2660 = vpop.f32.mrb[0].mxu0
        %v2661 = vadd.f32 0.0, %v2660
        %v2662 = vpop.f32.mrb[0].mxu0
        %2663 = vmatprep.mubr.f32.mxu0 0.0
        %2664 = vmatmul.mubr.f32.gmra.mrb[0].mxu0 %v2501
        %v2665 = vpop.f32.mrb[0].mxu0
        %v2666 = vadd.f32 0.0, %v2665
        %v2667 = vpop.f32.mrb[0].mxu0
        %2668 = vmatprep.mubr.f32.mxu0 0.0
        %2669 = vmatmul.mubr.f32.gmra.mrb[0].mxu0 %v2504
        %v2670 = vpop.f32.mrb[0].mxu0
        %v2671 = vadd.f32 0.0, %v2670
        %v2672 = vpop.f32.mrb[0].mxu0
        %2673 = vmatprep.mubr.f32.mxu0 0.0
        %2674 = vmatmul.mubr.f32.gmra.mrb[0].mxu0 %v2507
        %v2675 = vpop.f32.mrb[0].mxu0
        %v2676 = vadd.f32 0.0, %v2675
        %v2677 = vpop.f32.mrb[0].mxu0
        %2678 = vdwg.mxu0
        %2679 = vmatprep.subr.mxu0 0.0
        %2680 = vmatpush1.msra.mxu0 %v2439
        %2681 = vmatprep.subr.mxu0 0.0
        %2682 = vmatpush1.msra.mxu0 %v2444
        %2683 = vmatprep.subr.mxu0 0.0
        %2684 = vmatpush1.msra.mxu0 0.0
        %2685 = vmatprep.subr.mxu0 0.0
        %2686 = vmatpush1.msra.mxu0 0.0
        %2687 = vmatprep.subr.mxu0 0.0
        %2688 = vmatpush1.msra.mxu0 0.0
        %2689 = vmatprep.subr.mxu0 0.0
        %2690 = vmatpush1.msra.mxu0 0.0
        %2691 = vmatprep.subr.mxu0 0.0
        %2692 = vmatpush1.msra.mxu0 0.0
        %2693 = vmatprep.subr.mxu0 0.0
        %2694 = vmatpush1.msra.mxu0 0.0
        %2695 = vmatprep.subr.mxu0 0.0
        %2696 = vmatpush1.msra.mxu0 0.0
        %2697 = vmatprep.subr.mxu0 0.0
        %2698 = vmatpush1.msra.mxu0 0.0
        %2699 = vmatprep.subr.mxu0 0.0
        %2700 = vmatpush1.msra.mxu0 0.0
        %2701 = vmatprep.subr.mxu0 0.0
        %2702 = vmatpush1.msra.mxu0 0.0
        %2703 = vmatprep.subr.mxu0 0.0
        %2704 = vmatpush1.msra.mxu0 0.0
        %2705 = vmatprep.subr.mxu0 0.0
        %2706 = vmatpush1.msra.mxu0 0.0
        %2707 = vmatprep.subr.mxu0 0.0
        %2708 = vmatpush1.msra.mxu0 0.0
        %2709 = vmatprep.subr.mxu0 0.0
        %2710 = vmatpush1.msra.mxu0 0.0
        %2711 = vmatprep.subr.mxu0 0.0
        %2712 = vmatpush1.msra.mxu0 0.0
        %2713 = vmatprep.subr.mxu0 0.0
        %2714 = vmatpush1.msra.mxu0 0.0
        %2715 = vmatprep.subr.mxu0 0.0
        %2716 = vmatpush1.msra.mxu0 0.0
        %2717 = vmatprep.subr.mxu0 0.0
        %2718 = vmatpush1.msra.mxu0 0.0
        %2719 = vmatprep.subr.mxu0 0.0
        %2720 = vmatpush1.msra.mxu0 0.0
        %2721 = vmatprep.subr.mxu0 0.0
        %2722 = vmatpush1.msra.mxu0 0.0
        %2723 = vmatprep.subr.mxu0 0.0
        %2724 = vmatpush1.msra.mxu0 0.0
        %2725 = vmatprep.subr.mxu0 0.0
        %2726 = vmatpush1.msra.mxu0 0.0
        %2727 = vmatprep.subr.mxu0 0.0
        %2728 = vmatpush1.msra.mxu0 0.0
        %2729 = vmatprep.subr.mxu0 0.0
        %2730 = vmatpush1.msra.mxu0 0.0
        %2731 = vmatprep.subr.mxu0 0.0
        %2732 = vmatpush1.msra.mxu0 0.0
        %2733 = vmatprep.subr.mxu0 0.0
        %2734 = vmatpush1.msra.mxu0 0.0
        %2735 = vmatprep.subr.mxu0 0.0
        %2736 = vmatpush1.msra.mxu0 0.0
        %2737 = vmatprep.subr.mxu0 0.0
        %2738 = vmatpush1.msra.mxu0 0.0
        %2739 = vmatprep.subr.mxu0 0.0
        %2740 = vmatpush1.msra.mxu0 0.0
        %2741 = vmatprep.subr.mxu0 0.0
        %2742 = vmatpush1.msra.mxu0 0.0
        %2743 = vmatprep.mubr.f32.mxu0 0.0
        %2744 = vmatmul.mubr.f32.gmra.mrb[0].mxu0 %v2498
        %v2745 = vpop.f32.mrb[0].mxu0
        %v2746 = vadd.f32 0.0, %v2745
        %v2747 = vpop.f32.mrb[0].mxu0
        %2748 = vmatprep.mubr.f32.mxu0 0.0
        %2749 = vmatmul.mubr.f32.gmra.mrb[0].mxu0 %v2501
        %v2750 = vpop.f32.mrb[0].mxu0
        %v2751 = vadd.f32 0.0, %v2750
        %v2752 = vpop.f32.mrb[0].mxu0
        %2753 = vmatprep.mubr.f32.mxu0 0.0
        %2754 = vmatmul.mubr.f32.gmra.mrb[0].mxu0 %v2504
        %v2755 = vpop.f32.mrb[0].mxu0
        %v2756 = vadd.f32 0.0, %v2755
        %v2757 = vpop.f32.mrb[0].mxu0
        %2758 = vmatprep.mubr.f32.mxu0 0.0
        %2759 = vmatmul.mubr.f32.gmra.mrb[0].mxu0 %v2507
        %v2760 = vpop.f32.mrb[0].mxu0
        %v2761 = vadd.f32 0.0, %v2760
        %v2762 = vpop.f32.mrb[0].mxu0
        %2763 = vdwg.mxu0
        %2764 = vmatprep.subr.mxu0 0.0
        %2765 = vmatpush1.msra.mxu0 %v2449
        %2766 = vmatprep.subr.mxu0 0.0
        %2767 = vmatpush1.msra.mxu0 %v2454
        %2768 = vmatprep.subr.mxu0 0.0
        %2769 = vmatpush1.msra.mxu0 0.0
        %2770 = vmatprep.subr.mxu0 0.0
        %2771 = vmatpush1.msra.mxu0 0.0
        %2772 = vmatprep.subr.mxu0 0.0
        %2773 = vmatpush1.msra.mxu0 0.0
        %2774 = vmatprep.subr.mxu0 0.0
        %2775 = vmatpush1.msra.mxu0 0.0
        %2776 = vmatprep.subr.mxu0 0.0
        %2777 = vmatpush1.msra.mxu0 0.0
        %2778 = vmatprep.subr.mxu0 0.0
        %2779 = vmatpush1.msra.mxu0 0.0
        %2780 = vmatprep.subr.mxu0 0.0
        %2781 = vmatpush1.msra.mxu0 0.0
        %2782 = vmatprep.subr.mxu0 0.0
        %2783 = vmatpush1.msra.mxu0 0.0
        %2784 = vmatprep.subr.mxu0 0.0
        %2785 = vmatpush1.msra.mxu0 0.0
        %2786 = vmatprep.subr.mxu0 0.0
        %2787 = vmatpush1.msra.mxu0 0.0
        %2788 = vmatprep.subr.mxu0 0.0
        %2789 = vmatpush1.msra.mxu0 0.0
        %2790 = vmatprep.subr.mxu0 0.0
        %2791 = vmatpush1.msra.mxu0 0.0
        %2792 = vmatprep.subr.mxu0 0.0
        %2793 = vmatpush1.msra.mxu0 0.0
        %2794 = vmatprep.subr.mxu0 0.0
        %2795 = vmatpush1.msra.mxu0 0.0
        %2796 = vmatprep.subr.mxu0 0.0
        %2797 = vmatpush1.msra.mxu0 0.0
        %2798 = vmatprep.subr.mxu0 0.0
        %2799 = vmatpush1.msra.mxu0 0.0
        %2800 = vmatprep.subr.mxu0 0.0
        %2801 = vmatpush1.msra.mxu0 0.0
        %2802 = vmatprep.subr.mxu0 0.0
        %2803 = vmatpush1.msra.mxu0 0.0
        %2804 = vmatprep.subr.mxu0 0.0
        %2805 = vmatpush1.msra.mxu0 0.0
        %2806 = vmatprep.subr.mxu0 0.0
        %2807 = vmatpush1.msra.mxu0 0.0
        %2808 = vmatprep.subr.mxu0 0.0
        %2809 = vmatpush1.msra.mxu0 0.0
        %2810 = vmatprep.subr.mxu0 0.0
        %2811 = vmatpush1.msra.mxu0 0.0
        %2812 = vmatprep.subr.mxu0 0.0
        %2813 = vmatpush1.msra.mxu0 0.0
        %2814 = vmatprep.subr.mxu0 0.0
        %2815 = vmatpush1.msra.mxu0 0.0
        %2816 = vmatprep.subr.mxu0 0.0
        %2817 = vmatpush1.msra.mxu0 0.0
        %2818 = vmatprep.subr.mxu0 0.0
        %2819 = vmatpush1.msra.mxu0 0.0
        %2820 = vmatprep.subr.mxu0 0.0
        %2821 = vmatpush1.msra.mxu0 0.0
        %2822 = vmatprep.subr.mxu0 0.0
        %2823 = vmatpush1.msra.mxu0 0.0
        %2824 = vmatprep.subr.mxu0 0.0
        %2825 = vmatpush1.msra.mxu0 0.0
        %2826 = vmatprep.subr.mxu0 0.0
        %2827 = vmatpush1.msra.mxu0 0.0
        %2828 = vmatprep.mubr.f32.mxu0 0.0
        %2829 = vmatmul.mubr.f32.gmra.mrb[0].mxu0 %v2498
        %v2830 = vpop.f32.mrb[0].mxu0
        %v2831 = vadd.f32 0.0, %v2830
        %v2832 = vpop.f32.mrb[0].mxu0
        %2833 = vmatprep.mubr.f32.mxu0 0.0
        %2834 = vmatmul.mubr.f32.gmra.mrb[0].mxu0 %v2501
        %v2835 = vpop.f32.mrb[0].mxu0
        %v2836 = vadd.f32 0.0, %v2835
        %v2837 = vpop.f32.mrb[0].mxu0
        %2838 = vmatprep.mubr.f32.mxu0 0.0
        %2839 = vmatmul.mubr.f32.gmra.mrb[0].mxu0 %v2504
        %v2840 = vpop.f32.mrb[0].mxu0
        %v2841 = vadd.f32 0.0, %v2840
        %v2842 = vpop.f32.mrb[0].mxu0
        %2843 = vmatprep.mubr.f32.mxu0 0.0
        %2844 = vmatmul.mubr.f32.gmra.mrb[0].mxu0 %v2507
        %v2845 = vpop.f32.mrb[0].mxu0
        %v2846 = vadd.f32 0.0, %v2845
        %v2847 = vpop.f32.mrb[0].mxu0
        %2848 = vdwg.mxu0
        %2849 = vmatprep.subr.mxu0 0.0
        %2850 = vmatpush1.msra.mxu0 %v2459
        %2851 = vmatprep.subr.mxu0 0.0
        %2852 = vmatpush1.msra.mxu0 %v2464
        %2853 = vmatprep.subr.mxu0 0.0
        %2854 = vmatpush1.msra.mxu0 0.0
        %2855 = vmatprep.subr.mxu0 0.0
        %2856 = vmatpush1.msra.mxu0 0.0
        %2857 = vmatprep.subr.mxu0 0.0
        %2858 = vmatpush1.msra.mxu0 0.0
        %2859 = vmatprep.subr.mxu0 0.0
        %2860 = vmatpush1.msra.mxu0 0.0
        %2861 = vmatprep.subr.mxu0 0.0
        %2862 = vmatpush1.msra.mxu0 0.0
        %2863 = vmatprep.subr.mxu0 0.0
        %2864 = vmatpush1.msra.mxu0 0.0
        %2865 = vmatprep.subr.mxu0 0.0
        %2866 = vmatpush1.msra.mxu0 0.0
        %2867 = vmatprep.subr.mxu0 0.0
        %2868 = vmatpush1.msra.mxu0 0.0
        %2869 = vmatprep.subr.mxu0 0.0
        %2870 = vmatpush1.msra.mxu0 0.0
        %2871 = vmatprep.subr.mxu0 0.0
        %2872 = vmatpush1.msra.mxu0 0.0
        %2873 = vmatprep.subr.mxu0 0.0
        %2874 = vmatpush1.msra.mxu0 0.0
        %2875 = vmatprep.subr.mxu0 0.0
        %2876 = vmatpush1.msra.mxu0 0.0
        %2877 = vmatprep.subr.mxu0 0.0
        %2878 = vmatpush1.msra.mxu0 0.0
        %2879 = vmatprep.subr.mxu0 0.0
        %2880 = vmatpush1.msra.mxu0 0.0
        %2881 = vmatprep.subr.mxu0 0.0
        %2882 = vmatpush1.msra.mxu0 0.0
        %2883 = vmatprep.subr.mxu0 0.0
        %2884 = vmatpush1.msra.mxu0 0.0
        %2885 = vmatprep.subr.mxu0 0.0
        %2886 = vmatpush1.msra.mxu0 0.0
        %2887 = vmatprep.subr.mxu0 0.0
        %2888 = vmatpush1.msra.mxu0 0.0
        %2889 = vmatprep.subr.mxu0 0.0
        %2890 = vmatpush1.msra.mxu0 0.0
        %2891 = vmatprep.subr.mxu0 0.0
        %2892 = vmatpush1.msra.mxu0 0.0
        %2893 = vmatprep.subr.mxu0 0.0
        %2894 = vmatpush1.msra.mxu0 0.0
        %2895 = vmatprep.subr.mxu0 0.0
        %2896 = vmatpush1.msra.mxu0 0.0
        %2897 = vmatprep.subr.mxu0 0.0
        %2898 = vmatpush1.msra.mxu0 0.0
        %2899 = vmatprep.subr.mxu0 0.0
        %2900 = vmatpush1.msra.mxu0 0.0
        %2901 = vmatprep.subr.mxu0 0.0
        %2902 = vmatpush1.msra.mxu0 0.0
        %2903 = vmatprep.subr.mxu0 0.0
        %2904 = vmatpush1.msra.mxu0 0.0
        %2905 = vmatprep.subr.mxu0 0.0
        %2906 = vmatpush1.msra.mxu0 0.0
        %2907 = vmatprep.subr.mxu0 0.0
        %2908 = vmatpush1.msra.mxu0 0.0
        %2909 = vmatprep.subr.mxu0 0.0
        %2910 = vmatpush1.msra.mxu0 0.0
        %2911 = vmatprep.subr.mxu0 0.0
        %2912 = vmatpush1.msra.mxu0 0.0
        %2913 = vmatprep.mubr.f32.mxu0 0.0
        %2914 = vmatmul.mubr.f32.gmra.mrb[0].mxu0 %v2498
        %v2915 = vpop.f32.mrb[0].mxu0
        %v2916 = vadd.f32 0.0, %v2915
        %v2917 = vpop.f32.mrb[0].mxu0
        %2918 = vmatprep.mubr.f32.mxu0 0.0
        %2919 = vmatmul.mubr.f32.gmra.mrb[0].mxu0 %v2501
        %v2920 = vpop.f32.mrb[0].mxu0
        %v2921 = vadd.f32 0.0, %v2920
        %v2922 = vpop.f32.mrb[0].mxu0
        %2923 = vmatprep.mubr.f32.mxu0 0.0
        %2924 = vmatmul.mubr.f32.gmra.mrb[0].mxu0 %v2504
        %v2925 = vpop.f32.mrb[0].mxu0
        %v2926 = vadd.f32 0.0, %v2925
        %v2927 = vpop.f32.mrb[0].mxu0
        %2928 = vmatprep.mubr.f32.mxu0 0.0
        %2929 = vmatmul.mubr.f32.gmra.mrb[0].mxu0 %v2507
        %v2930 = vpop.f32.mrb[0].mxu0
        %v2931 = vadd.f32 0.0, %v2930
        %v2932 = vpop.f32.mrb[0].mxu0
        %2933 = vdwg.mxu0
        %2934 = vmatprep.subr.mxu0 0.0
        %2935 = vmatpush1.msra.mxu0 %v2469
        %2936 = vmatprep.subr.mxu0 0.0
        %2937 = vmatpush1.msra.mxu0 %v2474
        %2938 = vmatprep.subr.mxu0 0.0
        %2939 = vmatpush1.msra.mxu0 0.0
        %2940 = vmatprep.subr.mxu0 0.0
        %2941 = vmatpush1.msra.mxu0 0.0
        %2942 = vmatprep.subr.mxu0 0.0
        %2943 = vmatpush1.msra.mxu0 0.0
        %2944 = vmatprep.subr.mxu0 0.0
        %2945 = vmatpush1.msra.mxu0 0.0
        %2946 = vmatprep.subr.mxu0 0.0
        %2947 = vmatpush1.msra.mxu0 0.0
        %2948 = vmatprep.subr.mxu0 0.0
        %2949 = vmatpush1.msra.mxu0 0.0
        %2950 = vmatprep.subr.mxu0 0.0
        %2951 = vmatpush1.msra.mxu0 0.0
        %2952 = vmatprep.subr.mxu0 0.0
        %2953 = vmatpush1.msra.mxu0 0.0
        %2954 = vmatprep.subr.mxu0 0.0
        %2955 = vmatpush1.msra.mxu0 0.0
        %2956 = vmatprep.subr.mxu0 0.0
        %2957 = vmatpush1.msra.mxu0 0.0
        %2958 = vmatprep.subr.mxu0 0.0
        %2959 = vmatpush1.msra.mxu0 0.0
        %2960 = vmatprep.subr.mxu0 0.0
        %2961 = vmatpush1.msra.mxu0 0.0
        %2962 = vmatprep.subr.mxu0 0.0
        %2963 = vmatpush1.msra.mxu0 0.0
        %2964 = vmatprep.subr.mxu0 0.0
        %2965 = vmatpush1.msra.mxu0 0.0
        %2966 = vmatprep.subr.mxu0 0.0
        %2967 = vmatpush1.msra.mxu0 0.0
        %2968 = vmatprep.subr.mxu0 0.0
        %2969 = vmatpush1.msra.mxu0 0.0
        %2970 = vmatprep.subr.mxu0 0.0
        %2971 = vmatpush1.msra.mxu0 0.0
        %2972 = vmatprep.subr.mxu0 0.0
        %2973 = vmatpush1.msra.mxu0 0.0
        %2974 = vmatprep.subr.mxu0 0.0
        %2975 = vmatpush1.msra.mxu0 0.0
        %2976 = vmatprep.subr.mxu0 0.0
        %2977 = vmatpush1.msra.mxu0 0.0
        %2978 = vmatprep.subr.mxu0 0.0
        %2979 = vmatpush1.msra.mxu0 0.0
        %2980 = vmatprep.subr.mxu0 0.0
        %2981 = vmatpush1.msra.mxu0 0.0
        %2982 = vmatprep.subr.mxu0 0.0
        %2983 = vmatpush1.msra.mxu0 0.0
        %2984 = vmatprep.subr.mxu0 0.0
        %2985 = vmatpush1.msra.mxu0 0.0
        %2986 = vmatprep.subr.mxu0 0.0
        %2987 = vmatpush1.msra.mxu0 0.0
        %2988 = vmatprep.subr.mxu0 0.0
        %2989 = vmatpush1.msra.mxu0 0.0
        %2990 = vmatprep.subr.mxu0 0.0
        %2991 = vmatpush1.msra.mxu0 0.0
        %2992 = vmatprep.subr.mxu0 0.0
        %2993 = vmatpush1.msra.mxu0 0.0
        %2994 = vmatprep.subr.mxu0 0.0
        %2995 = vmatpush1.msra.mxu0 0.0
        %2996 = vmatprep.subr.mxu0 0.0
        %2997 = vmatpush1.msra.mxu0 0.0
        %2998 = vmatprep.mubr.f32.mxu0 0.0
        %2999 = vmatmul.mubr.f32.gmra.mrb[0].mxu0 %v2498
        %v3000 = vpop.f32.mrb[0].mxu0
        %v3001 = vadd.f32 0.0, %v3000
        %v3002 = vpop.f32.mrb[0].mxu0
        %3003 = vmatprep.mubr.f32.mxu0 0.0
        %3004 = vmatmul.mubr.f32.gmra.mrb[0].mxu0 %v2501
        %v3005 = vpop.f32.mrb[0].mxu0
        %v3006 = vadd.f32 0.0, %v3005
        %v3007 = vpop.f32.mrb[0].mxu0
        %3008 = vmatprep.mubr.f32.mxu0 0.0
        %3009 = vmatmul.mubr.f32.gmra.mrb[0].mxu0 %v2504
        %v3010 = vpop.f32.mrb[0].mxu0
        %v3011 = vadd.f32 0.0, %v3010
        %v3012 = vpop.f32.mrb[0].mxu0
        %3013 = vmatprep.mubr.f32.mxu0 0.0
        %3014 = vmatmul.mubr.f32.gmra.mrb[0].mxu0 %v2507
        %v3015 = vpop.f32.mrb[0].mxu0
        %v3016 = vadd.f32 0.0, %v3015
        %v3017 = vpop.f32.mrb[0].mxu0
        %3018 = vdwg.mxu0
        %3019 = vmatprep.subr.mxu0 0.0
        %3020 = vmatpush1.msra.mxu0 %v2479
        %3021 = vmatprep.subr.mxu0 0.0
        %3022 = vmatpush1.msra.mxu0 %v2484
        %3023 = vmatprep.subr.mxu0 0.0
        %3024 = vmatpush1.msra.mxu0 0.0
        %3025 = vmatprep.subr.mxu0 0.0
        %3026 = vmatpush1.msra.mxu0 0.0
        %3027 = vmatprep.subr.mxu0 0.0
        %3028 = vmatpush1.msra.mxu0 0.0
        %3029 = vmatprep.subr.mxu0 0.0
        %3030 = vmatpush1.msra.mxu0 0.0
        %3031 = vmatprep.subr.mxu0 0.0
        %3032 = vmatpush1.msra.mxu0 0.0
        %3033 = vmatprep.subr.mxu0 0.0
        %3034 = vmatpush1.msra.mxu0 0.0
        %3035 = vmatprep.subr.mxu0 0.0
        %3036 = vmatpush1.msra.mxu0 0.0
        %3037 = vmatprep.subr.mxu0 0.0
        %3038 = vmatpush1.msra.mxu0 0.0
        %3039 = vmatprep.subr.mxu0 0.0
        %3040 = vmatpush1.msra.mxu0 0.0
        %3041 = vmatprep.subr.mxu0 0.0
        %3042 = vmatpush1.msra.mxu0 0.0
        %3043 = vmatprep.subr.mxu0 0.0
        %3044 = vmatpush1.msra.mxu0 0.0
        %3045 = vmatprep.subr.mxu0 0.0
        %3046 = vmatpush1.msra.mxu0 0.0
        %3047 = vmatprep.subr.mxu0 0.0
        %3048 = vmatpush1.msra.mxu0 0.0
        %3049 = vmatprep.subr.mxu0 0.0
        %3050 = vmatpush1.msra.mxu0 0.0
        %3051 = vmatprep.subr.mxu0 0.0
        %3052 = vmatpush1.msra.mxu0 0.0
        %3053 = vmatprep.subr.mxu0 0.0
        %3054 = vmatpush1.msra.mxu0 0.0
        %3055 = vmatprep.subr.mxu0 0.0
        %3056 = vmatpush1.msra.mxu0 0.0
        %3057 = vmatprep.subr.mxu0 0.0
        %3058 = vmatpush1.msra.mxu0 0.0
        %3059 = vmatprep.subr.mxu0 0.0
        %3060 = vmatpush1.msra.mxu0 0.0
        %3061 = vmatprep.subr.mxu0 0.0
        %3062 = vmatpush1.msra.mxu0 0.0
        %3063 = vmatprep.subr.mxu0 0.0
        %3064 = vmatpush1.msra.mxu0 0.0
        %3065 = vmatprep.subr.mxu0 0.0
        %3066 = vmatpush1.msra.mxu0 0.0
        %3067 = vmatprep.subr.mxu0 0.0
        %3068 = vmatpush1.msra.mxu0 0.0
        %3069 = vmatprep.subr.mxu0 0.0
        %3070 = vmatpush1.msra.mxu0 0.0
        %3071 = vmatprep.subr.mxu0 0.0
        %3072 = vmatpush1.msra.mxu0 0.0
        %3073 = vmatprep.subr.mxu0 0.0
        %3074 = vmatpush1.msra.mxu0 0.0
        %3075 = vmatprep.subr.mxu0 0.0
        %3076 = vmatpush1.msra.mxu0 0.0
        %3077 = vmatprep.subr.mxu0 0.0
        %3078 = vmatpush1.msra.mxu0 0.0
        %3079 = vmatprep.subr.mxu0 0.0
        %3080 = vmatpush1.msra.mxu0 0.0
        %3081 = vmatprep.subr.mxu0 0.0
        %3082 = vmatpush1.msra.mxu0 0.0
        %3083 = vmatprep.mubr.f32.mxu0 0.0
        %3084 = vmatmul.mubr.f32.gmra.mrb[0].mxu0 %v2498
        %v3085 = vpop.f32.mrb[0].mxu0
        %v3086 = vadd.f32 0.0, %v3085
        %v3087 = vpop.f32.mrb[0].mxu0
        %3088 = vmatprep.mubr.f32.mxu0 0.0
        %3089 = vmatmul.mubr.f32.gmra.mrb[0].mxu0 %v2501
        %v3090 = vpop.f32.mrb[0].mxu0
        %v3091 = vadd.f32 0.0, %v3090
        %v3092 = vpop.f32.mrb[0].mxu0
        %3093 = vmatprep.mubr.f32.mxu0 0.0
        %3094 = vmatmul.mubr.f32.gmra.mrb[0].mxu0 %v2504
        %v3095 = vpop.f32.mrb[0].mxu0
        %v3096 = vadd.f32 0.0, %v3095
        %v3097 = vpop.f32.mrb[0].mxu0
        %3098 = vmatprep.mubr.f32.mxu0 0.0
        %3099 = vmatmul.mubr.f32.gmra.mrb[0].mxu0 %v2507
        %v3100 = vpop.f32.mrb[0].mxu0
        %v3101 = vadd.f32 0.0, %v3100
        %v3102 = vpop.f32.mrb[0].mxu0
        %3103 = vdwg.mxu0
        %3104 = vmatprep.subr.mxu0 0.0
        %3105 = vmatpush1.msra.mxu0 %v2489
        %3106 = vmatprep.subr.mxu0 0.0
        %3107 = vmatpush1.msra.mxu0 %v2494
        %3108 = vmatprep.subr.mxu0 0.0
        %3109 = vmatpush1.msra.mxu0 0.0
        %3110 = vmatprep.subr.mxu0 0.0
        %3111 = vmatpush1.msra.mxu0 0.0
        %3112 = vmatprep.subr.mxu0 0.0
        %3113 = vmatpush1.msra.mxu0 0.0
        %3114 = vmatprep.subr.mxu0 0.0
        %3115 = vmatpush1.msra.mxu0 0.0
        %3116 = vmatprep.subr.mxu0 0.0
        %3117 = vmatpush1.msra.mxu0 0.0
        %3118 = vmatprep.subr.mxu0 0.0
        %3119 = vmatpush1.msra.mxu0 0.0
        %3120 = vmatprep.subr.mxu0 0.0
        %3121 = vmatpush1.msra.mxu0 0.0
        %3122 = vmatprep.subr.mxu0 0.0
        %3123 = vmatpush1.msra.mxu0 0.0
        %3124 = vmatprep.subr.mxu0 0.0
        %3125 = vmatpush1.msra.mxu0 0.0
        %3126 = vmatprep.subr.mxu0 0.0
        %3127 = vmatpush1.msra.mxu0 0.0
        %3128 = vmatprep.subr.mxu0 0.0
        %3129 = vmatpush1.msra.mxu0 0.0
        %3130 = vmatprep.subr.mxu0 0.0
        %3131 = vmatpush1.msra.mxu0 0.0
        %3132 = vmatprep.subr.mxu0 0.0
        %3133 = vmatpush1.msra.mxu0 0.0
        %3134 = vmatprep.subr.mxu0 0.0
        %3135 = vmatpush1.msra.mxu0 0.0
        %3136 = vmatprep.subr.mxu0 0.0
        %3137 = vmatpush1.msra.mxu0 0.0
        %3138 = vmatprep.subr.mxu0 0.0
        %3139 = vmatpush1.msra.mxu0 0.0
        %3140 = vmatprep.subr.mxu0 0.0
        %3141 = vmatpush1.msra.mxu0 0.0
        %3142 = vmatprep.subr.mxu0 0.0
        %3143 = vmatpush1.msra.mxu0 0.0
        %3144 = vmatprep.subr.mxu0 0.0
        %3145 = vmatpush1.msra.mxu0 0.0
        %3146 = vmatprep.subr.mxu0 0.0
        %3147 = vmatpush1.msra.mxu0 0.0
        %3148 = vmatprep.subr.mxu0 0.0
        %3149 = vmatpush1.msra.mxu0 0.0
        %3150 = vmatprep.subr.mxu0 0.0
        %3151 = vmatpush1.msra.mxu0 0.0
        %3152 = vmatprep.subr.mxu0 0.0
        %3153 = vmatpush1.msra.mxu0 0.0
        %3154 = vmatprep.subr.mxu0 0.0
        %3155 = vmatpush1.msra.mxu0 0.0
        %3156 = vmatprep.subr.mxu0 0.0
        %3157 = vmatpush1.msra.mxu0 0.0
        %3158 = vmatprep.subr.mxu0 0.0
        %3159 = vmatpush1.msra.mxu0 0.0
        %3160 = vmatprep.subr.mxu0 0.0
        %3161 = vmatpush1.msra.mxu0 0.0
        %3162 = vmatprep.subr.mxu0 0.0
        %3163 = vmatpush1.msra.mxu0 0.0
        %3164 = vmatprep.subr.mxu0 0.0
        %3165 = vmatpush1.msra.mxu0 0.0
        %3166 = vmatprep.subr.mxu0 0.0
        %3167 = vmatpush1.msra.mxu0 0.0
        %3168 = vmatprep.mubr.f32.mxu0 0.0
        %3169 = vmatmul.mubr.f32.gmra.mrb[0].mxu0 %v2498
        %v3170 = vpop.f32.mrb[0].mxu0
        %v3171 = vadd.f32 0.0, %v3170
        %v3172 = vpop.f32.mrb[0].mxu0
        %3173 = vmatprep.mubr.f32.mxu0 0.0
        %3174 = vmatmul.mubr.f32.gmra.mrb[0].mxu0 %v2501
        %v3175 = vpop.f32.mrb[0].mxu0
        %v3176 = vadd.f32 0.0, %v3175
        %v3177 = vpop.f32.mrb[0].mxu0
        %3178 = vmatprep.mubr.f32.mxu0 0.0
        %3179 = vmatmul.mubr.f32.gmra.mrb[0].mxu0 %v2504
        %v3180 = vpop.f32.mrb[0].mxu0
        %v3181 = vadd.f32 0.0, %v3180
        %v3182 = vpop.f32.mrb[0].mxu0
        %3183 = vmatprep.mubr.f32.mxu0 0.0
        %3184 = vmatmul.mubr.f32.gmra.mrb[0].mxu0 %v2507
        %v3185 = vpop.f32.mrb[0].mxu0
        %v3186 = vadd.f32 0.0, %v3185
        %v3187 = vpop.f32.mrb[0].mxu0
        %3188 = vdwg.mxu0
        %v3189 = vld [vmem:[%s330] sm:$0xff]
        %v3190 = vld [vmem:[%s330 + $0x8] sm:$0xff]
        %v3191 = vld [vmem:[%s330 + $0x10] sm:$0xff]
        %v3192 = vld [vmem:[%s330 + $0x18] sm:$0xff]
        %v3193 = vld [vmem:[%s330 + $0x20] sm:$0xff]
        %v3194 = vld [vmem:[%s330 + $0x28] sm:$0xff]
        %v3195 = vld [vmem:[%s330 + $0x30] sm:$0xff]
        %v3196 = vld [vmem:[%s330 + $0x38] sm:$0xff]
        %v3197 = vld [vmem:[%s330 + $0x40] sm:$0xff]
        %v3198 = vld [vmem:[%s330 + $0x48] sm:$0xff]
        %v3199 = vld [vmem:[%s330 + $0x50] sm:$0xff]
        %v3200 = vld [vmem:[%s330 + $0x58] sm:$0xff]
        %v3201 = vld [vmem:[%s330 + $0x60] sm:$0xff]
        %v3202 = vld [vmem:[%s330 + $0x68] sm:$0xff]
        %v3203 = vld [vmem:[%s330 + $0x70] sm:$0xff]
        %v3204 = vld [vmem:[%s330 + $0x78] sm:$0xff]
        %v3205 = vmul.f32 %v2576, %v3189
        %v3206 = vmul.f32 %v2581, %v3190
        %v3207 = vmul.f32 %v2586, %v3191
        %v3208 = vmul.f32 %v2591, %v3192
        %v3209 = vmul.f32 %v2661, %v3193
        %v3210 = vmul.f32 %v2666, %v3194
        %v3211 = vmul.f32 %v2671, %v3195
        %v3212 = vmul.f32 %v2676, %v3196
        %v3213 = vmul.f32 %v2746, %v3197
        %v3214 = vmul.f32 %v2751, %v3198
        %v3215 = vmul.f32 %v2756, %v3199
        %v3216 = vmul.f32 %v2761, %v3200
        %v3217 = vmul.f32 %v2831, %v3201
        %v3218 = vmul.f32 %v2836, %v3202
        %v3219 = vmul.f32 %v2841, %v3203
        %v3220 = vmul.f32 %v2846, %v3204
        %v3221 = vadd.f32 %v3205, %v2916
        %v3222 = vadd.f32 %v3206, %v2921
        %v3223 = vadd.f32 %v3207, %v2926
        %v3224 = vadd.f32 %v3208, %v2931
        %v3225 = vadd.f32 %v3209, %v3001
        %v3226 = vadd.f32 %v3210, %v3006
        %v3227 = vadd.f32 %v3211, %v3011
        %v3228 = vadd.f32 %v3212, %v3016
        %v3229 = vadd.f32 %v3213, %v3086
        %v3230 = vadd.f32 %v3214, %v3091
        %v3231 = vadd.f32 %v3215, %v3096
        %v3232 = vadd.f32 %v3216, %v3101
        %v3233 = vadd.f32 %v3217, %v3171
        %v3234 = vadd.f32 %v3218, %v3176
        %v3235 = vadd.f32 %v3219, %v3181
        %v3236 = vadd.f32 %v3220, %v3186
        %v3237 = vmax.f32 %v3221, 0.0
        %v3238 = vmax.f32 %v3222, 0.0
        %v3239 = vmax.f32 %v3223, 0.0
        %v3240 = vmax.f32 %v3224, 0.0
        %v3241 = vmax.f32 %v3225, 0.0
        %v3242 = vmax.f32 %v3226, 0.0
        %v3243 = vmax.f32 %v3227, 0.0
        %v3244 = vmax.f32 %v3228, 0.0
        %v3245 = vmax.f32 %v3229, 0.0
        %v3246 = vmax.f32 %v3230, 0.0
        %v3247 = vmax.f32 %v3231, 0.0
        %v3248 = vmax.f32 %v3232, 0.0
        %v3249 = vmax.f32 %v3233, 0.0
        %v3250 = vmax.f32 %v3234, 0.0
        %v3251 = vmax.f32 %v3235, 0.0
        %v3252 = vmax.f32 %v3236, 0.0
        %v3253 = vmin.f32 %v3237, 1.0
        %v3254 = vmin.f32 %v3238, 1.0
        %v3255 = vmin.f32 %v3239, 1.0
        %v3256 = vmin.f32 %v3240, 1.0
        %v3257 = vmin.f32 %v3241, 1.0
        %v3258 = vmin.f32 %v3242, 1.0
        %v3259 = vmin.f32 %v3243, 1.0
        %v3260 = vmin.f32 %v3244, 1.0
        %v3261 = vmin.f32 %v3245, 1.0
        %v3262 = vmin.f32 %v3246, 1.0
        %v3263 = vmin.f32 %v3247, 1.0
        %v3264 = vmin.f32 %v3248, 1.0
        %v3265 = vmin.f32 %v3249, 1.0
        %v3266 = vmin.f32 %v3250, 1.0
        %v3267 = vmin.f32 %v3251, 1.0
        %v3268 = vmin.f32 %v3252, 1.0
        %vm3269 = vcmask 261120
        %3270 = vst.msk [vmem:[%s310] sm:$0xff] %vm3269, %v3253
        %3271 = vst.msk [vmem:[%s310 + $0x8] sm:$0xff] %vm3269, %v3254
        %3272 = vst.msk [vmem:[%s310 + $0x10] sm:$0xff] %vm3269, %v3255
        %3273 = vst.msk [vmem:[%s310 + $0x18] sm:$0xff] %vm3269, %v3256
        %3274 = vst.msk [vmem:[%s310 + $0x20] sm:$0xff] %vm3269, %v3257
        %3275 = vst.msk [vmem:[%s310 + $0x28] sm:$0xff] %vm3269, %v3258
        %3276 = vst.msk [vmem:[%s310 + $0x30] sm:$0xff] %vm3269, %v3259
        %3277 = vst.msk [vmem:[%s310 + $0x38] sm:$0xff] %vm3269, %v3260
        %3278 = vst.msk [vmem:[%s310 + $0x40] sm:$0xff] %vm3269, %v3261
        %3279 = vst.msk [vmem:[%s310 + $0x48] sm:$0xff] %vm3269, %v3262
        %3280 = vst.msk [vmem:[%s310 + $0x50] sm:$0xff] %vm3269, %v3263
        %3281 = vst.msk [vmem:[%s310 + $0x58] sm:$0xff] %vm3269, %v3264
        %3282 = vst.msk [vmem:[%s310 + $0x60] sm:$0xff] %vm3269, %v3265
        %3283 = vst.msk [vmem:[%s310 + $0x68] sm:$0xff] %vm3269, %v3266
        %3284 = vst.msk [vmem:[%s310 + $0x70] sm:$0xff] %vm3269, %v3267
        %3285 = vst.msk [vmem:[%s310 + $0x78] sm:$0xff] %vm3269, %v3268
        %s3286 = sand.u32 %s191, 1
        %s3287 = scalar_lea.sflag [#allocation3], %s3286
        %s3288 = sand.u32 %s191, 1
        %s3289 = smul.addr %s3288, 128
        %s3290 = scalar_lea.vmem [#allocation2], %s3289
        // Predicated region
        $region49: #{tpu_custom_call.1} parent=47 // pred_check
          %p3291 = pneg %p201
        $region50: #{tpu_custom_call.1} parent=47 // pred_check_branch
          %3293 = sbr.rel (%p3291) target = $region52
        $region51: #{tpu_custom_call.1} parent=47 // pred_region
          %s3294 = smul.u32 4, %s21
          %s3296 = ssub.s32 2048, 2048
          %3297 = vsyncadd %s3287, %s3296
          %s3298 = smul.addr %s3294, 4
          %s3299 = smul.addr %s3298, 128
          %s3300 = scalar_lea.hbm %s7, %s3299
          %s3301 = sshll.u32 %s3290, 4
          %s3302 = int_to_ptr.vmem [resolvable:$true] %s3301
          %3307 = dma.vmem_to_hbm [thread:$0]  %s3302, 2048, %s3300, %s3287, 128, 128, 8
        $region52: #{tpu_custom_call.1} parent=47 // pred_fallthru
          _
      $region48: #{tpu_custom_call.1} parent=5 // pred_fallthru
        _
      %p3308 = scmp.le.s32.totalorder 2, %s16
      // Predicated region
      $region53: #{tpu_custom_call.1} parent=5 // pred_check
        %p3309 = pneg %p3308
      $region54: #{tpu_custom_call.1} parent=5 // pred_check_branch
        %3311 = sbr.rel (%p3309) target = $region56
      $region55: #{tpu_custom_call.1} parent=5 // pred_region
        %s3312 = ssub.s32 %s16, 2
        // Predicated region
        $region57: #{tpu_custom_call.1} parent=55 // pred_check
          %p3313 = pneg %p207
        $region58: #{tpu_custom_call.1} parent=55 // pred_check_branch
          %3315 = sbr.rel (%p3313) target = $region60
        $region59: #{tpu_custom_call.1} parent=55 // pred_region
          %s3316 = sand.u32 %s192, 1
          %s3317 = scalar_lea.sflag [#allocation3], %s3316
          %s3318 = sand.u32 %s192, 1
          %s3319 = smul.addr %s3318, 128
          %s3320 = scalar_lea.vmem [#allocation2], %s3319
          %3321 = dma.done %s3317, 2048
        $region60: #{tpu_custom_call.1} parent=55 // pred_fallthru
          _
      $region56: #{tpu_custom_call.1} parent=5 // pred_fallthru
        _
    $region6: #{tpu_custom_call.1} parent=1 // loop_footer
      %s20 = sadd.s32 1, %s16
    $region7: #{tpu_custom_call.1} parent=1 // loop_footer_branch
      %15 = sbr.rel target = $region3
    $region8: #{tpu_custom_call.1} parent=1 // loop_exit
      _
    %3322 = vsyncpa [#allocation3], 1
    %s3323 = scalar_lea.sflag [#allocation3], 1
    %3324 = vsyncpa %s3323, 1

</llo_original>
